<compile_context>
chip_gen: v6e
topology: v6e:2x2x1
jax: 0.10.0
libtpu: 0.0.40
codegen_flags: <defaults>
</compile_context>

<pallas_src>
import jax
import jax.numpy as jnp
from jax.experimental import pallas as pl
from jax.experimental.pallas import tpu as pltpu

EPS = 1e-5


# --------------------------------- kernel -----------------------------------

def _make_kernel(inv_count):
    def kernel(x_ref, pu_ref, pd_ref,
               b1_ref, g1_ref, be1_ref,
               b2_ref, g2_ref, be2_ref,
               mcb_ref, out_ref):
        x = x_ref[...]                       # (NH, WC) lane-packed activations
        pu = pu_ref[...]                     # (NH, NH) reflect row-shift (up)
        pd = pd_ref[...]                     # (NH, NH) reflect row-shift (down)
        mcb = mcb_ref[...]                   # (WC, WC) channel collapse+bcast

        def conv_bn(inp, b_ref, g_ref, be_ref):
            # Row-shifted copies (H-axis reflect handled by the 0/1 matrices).
            up = jnp.dot(pu, inp, preferred_element_type=jnp.float32)
            dn = jnp.dot(pd, inp, preferred_element_type=jnp.float32)
            cat = jnp.concatenate([up, inp, dn], axis=1)          # (NH, 3*WC)
            # One banded matmul = full 3x3 conv with W-axis reflect folded in.
            y = jnp.dot(cat, b_ref[...], preferred_element_type=jnp.float32)
            # BatchNorm (training statistics). Conv bias omitted: it is
            # cancelled exactly by the batch-mean subtraction.
            s1 = jnp.sum(jnp.dot(y, mcb, preferred_element_type=jnp.float32),
                         axis=0, keepdims=True)                   # (1, WC) per-chan sum
            s2 = jnp.sum(jnp.dot(y * y, mcb,
                                 preferred_element_type=jnp.float32),
                         axis=0, keepdims=True)                   # (1, WC) per-chan sumsq
            mean = s1 * inv_count
            var = s2 * inv_count - mean * mean                    # biased var
            scale = g_ref[...] * jax.lax.rsqrt(var + EPS)
            shift = be_ref[...] - mean * scale
            return y * scale + shift                              # one FMA pass

        y = jnp.maximum(conv_bn(x, b1_ref, g1_ref, be1_ref), 0.0)
        z = conv_bn(y, b2_ref, g2_ref, be2_ref)
        out_ref[...] = x + z                                      # residual

    return kernel


# --------------------------- parameter preprocessing -------------------------

def _reflect(i, L):
    if i < 0:
        return -i
    if i >= L:
        return 2 * L - 2 - i
    return i


def _pack_params(params, N, H, W, C):
    (w1, _b1, g1, be1, w2, _b2, g2, be2) = params
    WC = W * C

    def banded(w9):
        # w9: (9, Cin, Cout) taps. Returns (3*WC, WC) = [B_dy=-1; B_dy=0; B_dy=+1].
        bands = []
        for dy in range(3):
            B = jnp.zeros((WC, WC), jnp.float32)
            for dx in range(3):
                src = jnp.array([_reflect(w + dx - 1, W) for w in range(W)],
                                jnp.int32)
                sel = (jnp.arange(W)[:, None] == src[None, :]).astype(jnp.float32)
                B = B + jnp.kron(sel, w9[dy * 3 + dx])
            bands.append(B)
        return jnp.concatenate(bands, axis=0)

    def rowshift(offset):
        # P such that (P @ X)[n*H + h] = X[n*H + reflect(h + offset)]
        src = jnp.array([_reflect(h + offset, H) for h in range(H)], jnp.int32)
        sh = (jnp.arange(H)[None, :] == src[:, None]).astype(jnp.float32)
        return jnp.kron(jnp.eye(N, dtype=jnp.float32), sh)         # (N*H, N*H)

    def lanes(v):
        # per-channel vector -> lane-packed (1, W*C), value at lane w*C + c.
        return jnp.tile(jnp.asarray(v, jnp.float32).reshape(-1), W).reshape(1, WC)

    mcb = jnp.tile(jnp.eye(C, dtype=jnp.float32), (W, W))          # (WC, WC)
    return (rowshift(-1), rowshift(+1),
            banded(w1), lanes(g1), lanes(be1),
            banded(w2), lanes(g2), lanes(be2),
            mcb)


# --------------------------------- wrapper -----------------------------------

def resnet_block(x_nchw, params):
    """PyTorch-facing wrapper: NCHW in, NCHW out."""
    N, C, H, W = x_nchw.shape
    NH, WC = N * H, W * C
    x2d = jnp.transpose(x_nchw, (0, 2, 3, 1)).reshape(NH, WC)      # lane-packed
    packed = _pack_params(params, N, H, W, C)

    full = lambda shape: pl.BlockSpec(shape, lambda i: (0,) * len(shape))
    in_specs = [full((NH, WC)),                                    # x
                full((NH, NH)), full((NH, NH)),                    # row shifts
                full((3 * WC, WC)), full((1, WC)), full((1, WC)),  # conv1 / BN1
                full((3 * WC, WC)), full((1, WC)), full((1, WC)),  # conv2 / BN2
                full((WC, WC))]                                    # channel collapse

    out2d = pl.pallas_call(
        _make_kernel(1.0 / (N * H * W)),
        out_shape=jax.ShapeDtypeStruct((NH, WC), jnp.float32),
        grid=(1,),
        in_specs=in_specs,
        out_specs=full((NH, WC)),
        compiler_params=pltpu.CompilerParams(
            dimension_semantics=("arbitrary",)),
    )(x2d, *packed)

    return jnp.transpose(out2d.reshape(N, H, W, C), (0, 3, 1, 2))


# ----------------------- pure-JAX reference (for checking) -------------------

def _ref_block(x_nhwc, params):
    (w1, b1, g1, be1, w2, b2, g2, be2) = params
    C = x_nhwc.shape[-1]

    def conv(y, w9, b):
        w_hwio = w9.reshape(3, 3, C, C)
        yp = jnp.pad(y, ((0, 0), (1, 1), (1, 1), (0, 0)), mode='reflect')
        out = jax.lax.conv_general_dilated(
            yp, w_hwio, window_strides=(1, 1), padding='VALID',
            dimension_numbers=('NHWC', 'HWIO', 'NHWC'))
        return out + b.reshape(1, 1, 1, C)

    def bn(y, g, be):
        mean = jnp.mean(y, axis=(0, 1, 2), keepdims=True)
        var = jnp.mean((y - mean) ** 2, axis=(0, 1, 2), keepdims=True)
        return (y - mean) * jax.lax.rsqrt(var + EPS) * g.reshape(1, 1, 1, C) \
            + be.reshape(1, 1, 1, C)

    y = jnp.maximum(bn(conv(x_nhwc, w1, b1), g1, be1), 0.0)
    z = bn(conv(y, w2, b2), g2, be2)
    return x_nhwc + z


# ----------------------------------- main ------------------------------------

if __name__ == "__main__":
    N, C, H, W = 2, 8, 16, 16   # dim = 8  ->  W*C = 128 (lane-dense)
    key = jax.random.PRNGKey(0)
    kx, kw1, kb1, kw2, kb2 = jax.random.split(key, 5)

    x_nchw = jax.random.normal(kx, (N, C, H, W), jnp.float32)

    # Conv2d weights as 9 taps of (Cin, Cout); BatchNorm affine gamma=1,
    # beta=0 (fresh nn.BatchNorm2d).  Biases are part of the spec / reference;
    # the kernel folds them out (cancelled by training-mode BN).
    w1 = 0.1 * jax.random.normal(kw1, (9, C, C), jnp.float32)
    b1 = 0.05 * jax.random.normal(kb1, (1, C), jnp.float32)
    w2 = 0.1 * jax.random.normal(kw2, (9, C, C), jnp.float32)
    b2 = 0.05 * jax.random.normal(kb2, (1, C), jnp.float32)
    g1 = jnp.ones((1, C), jnp.float32)
    be1 = jnp.zeros((1, C), jnp.float32)
    g2 = jnp.ones((1, C), jnp.float32)
    be2 = jnp.zeros((1, C), jnp.float32)
    params = (w1, b1, g1, be1, w2, b2, g2, be2)

    out = resnet_block(x_nchw, params)
    out = jax.block_until_ready(out)

    # correctness check against pure-JAX reference (bias + reflect pad + BN)
    x_nhwc = jnp.transpose(x_nchw, (0, 2, 3, 1))
    ref = jnp.transpose(_ref_block(x_nhwc, params), (0, 3, 1, 2))
    assert out.shape == (N, C, H, W)
    assert jnp.allclose(out, ref, atol=2e-4, rtol=2e-4), \
        float(jnp.max(jnp.abs(out - ref)))

    print("KERNEL_OK")
</pallas_src>

<mosaic_0001>
module attributes {stable_mosaic.version = 11 : i64} {
  func.func @kernel(%arg0: i32, %arg1: memref<32x128xf32, #tpu.memory_space<vmem>>, %arg2: memref<32x32xf32, #tpu.memory_space<vmem>>, %arg3: memref<32x32xf32, #tpu.memory_space<vmem>>, %arg4: memref<384x128xf32, #tpu.memory_space<vmem>>, %arg5: memref<1x128xf32, #tpu.memory_space<vmem>>, %arg6: memref<1x128xf32, #tpu.memory_space<vmem>>, %arg7: memref<384x128xf32, #tpu.memory_space<vmem>>, %arg8: memref<1x128xf32, #tpu.memory_space<vmem>>, %arg9: memref<1x128xf32, #tpu.memory_space<vmem>>, %arg10: memref<128x128xf32, #tpu.memory_space<vmem>>, %arg11: memref<32x128xf32, #tpu.memory_space<vmem>>) attributes {dimension_semantics = [#tpu.dimension_semantics<arbitrary>], iteration_bounds = array<i64: 1>, scalar_prefetch = 0 : i64, scratch_operands = 0 : i64, tpu.core_type = #tpu.core_type<tc>, window_params = [{pipeline_mode = #tpu.pipeline_mode<synchronous>, transform_indices = @transform_0, window_bounds = array<i64: 32, 128>}, {pipeline_mode = #tpu.pipeline_mode<synchronous>, transform_indices = @transform_1, window_bounds = array<i64: 32, 32>}, {pipeline_mode = #tpu.pipeline_mode<synchronous>, transform_indices = @transform_2, window_bounds = array<i64: 32, 32>}, {pipeline_mode = #tpu.pipeline_mode<synchronous>, transform_indices = @transform_3, window_bounds = array<i64: 384, 128>}, {pipeline_mode = #tpu.pipeline_mode<synchronous>, transform_indices = @transform_4, window_bounds = array<i64: 1, 128>}, {pipeline_mode = #tpu.pipeline_mode<synchronous>, transform_indices = @transform_5, window_bounds = array<i64: 1, 128>}, {pipeline_mode = #tpu.pipeline_mode<synchronous>, transform_indices = @transform_6, window_bounds = array<i64: 384, 128>}, {pipeline_mode = #tpu.pipeline_mode<synchronous>, transform_indices = @transform_7, window_bounds = array<i64: 1, 128>}, {pipeline_mode = #tpu.pipeline_mode<synchronous>, transform_indices = @transform_8, window_bounds = array<i64: 1, 128>}, {pipeline_mode = #tpu.pipeline_mode<synchronous>, transform_indices = @transform_9, window_bounds = array<i64: 128, 128>}, {pipeline_mode = #tpu.pipeline_mode<synchronous>, transform_indices = @transform_10, window_bounds = array<i64: 32, 128>}]} {
    %c0 = arith.constant 0 : index
    %c0_0 = arith.constant 0 : index
    %0 = vector.load %arg1[%c0, %c0_0] : memref<32x128xf32, #tpu.memory_space<vmem>>, vector<32x128xf32>
    %c0_1 = arith.constant 0 : index
    %c0_2 = arith.constant 0 : index
    %1 = vector.load %arg2[%c0_1, %c0_2] : memref<32x32xf32, #tpu.memory_space<vmem>>, vector<32x32xf32>
    %c0_3 = arith.constant 0 : index
    %c0_4 = arith.constant 0 : index
    %2 = vector.load %arg3[%c0_3, %c0_4] : memref<32x32xf32, #tpu.memory_space<vmem>>, vector<32x32xf32>
    %c0_5 = arith.constant 0 : index
    %c0_6 = arith.constant 0 : index
    %3 = vector.load %arg10[%c0_5, %c0_6] : memref<128x128xf32, #tpu.memory_space<vmem>>, vector<128x128xf32>
    %cst = arith.constant dense<0.000000e+00> : vector<32x128xf32>
    %4 = tpu.matmul %1, %0, %cst {dimension_numbers = #tpu.dot_dimension_numbers<[1], [0], [0], [1], [0, 0, 1, 1], [], []>} : vector<32x32xf32>, vector<32x128xf32>, vector<32x128xf32> -> vector<32x128xf32>
    %cst_7 = arith.constant dense<0.000000e+00> : vector<32x128xf32>
    %5 = tpu.matmul %2, %0, %cst_7 {dimension_numbers = #tpu.dot_dimension_numbers<[1], [0], [0], [1], [0, 0, 1, 1], [], []>} : vector<32x32xf32>, vector<32x128xf32>, vector<32x128xf32> -> vector<32x128xf32>
    %6 = tpu.concatenate %4, %0, %5 in 1 : vector<32x128xf32>, vector<32x128xf32>, vector<32x128xf32> -> vector<32x384xf32>
    %c0_8 = arith.constant 0 : index
    %c0_9 = arith.constant 0 : index
    %7 = vector.load %arg4[%c0_8, %c0_9] : memref<384x128xf32, #tpu.memory_space<vmem>>, vector<384x128xf32>
    %cst_10 = arith.constant dense<0.000000e+00> : vector<32x128xf32>
    %8 = tpu.matmul %6, %7, %cst_10 {dimension_numbers = #tpu.dot_dimension_numbers<[1], [0], [0], [1], [0, 0, 1, 1], [], []>} : vector<32x384xf32>, vector<384x128xf32>, vector<32x128xf32> -> vector<32x128xf32>
    %cst_11 = arith.constant dense<0.000000e+00> : vector<32x128xf32>
    %9 = tpu.matmul %8, %3, %cst_11 {dimension_numbers = #tpu.dot_dimension_numbers<[1], [0], [0], [1], [0, 0, 1, 1], [], []>} : vector<32x128xf32>, vector<128x128xf32>, vector<32x128xf32> -> vector<32x128xf32>
    %cst_12 = arith.constant dense<0.000000e+00> : vector<128xf32>
    %10 = vector.multi_reduction <add>, %9, %cst_12 [0] : vector<32x128xf32> to vector<128xf32>
    %11 = vector.shape_cast %10 : vector<128xf32> to vector<1x128xf32>
    %12 = arith.mulf %8, %8 : vector<32x128xf32>
    %cst_13 = arith.constant dense<0.000000e+00> : vector<32x128xf32>
    %13 = tpu.matmul %12, %3, %cst_13 {dimension_numbers = #tpu.dot_dimension_numbers<[1], [0], [0], [1], [0, 0, 1, 1], [], []>} : vector<32x128xf32>, vector<128x128xf32>, vector<32x128xf32> -> vector<32x128xf32>
    %cst_14 = arith.constant dense<0.000000e+00> : vector<128xf32>
    %14 = vector.multi_reduction <add>, %13, %cst_14 [0] : vector<32x128xf32> to vector<128xf32>
    %15 = vector.shape_cast %14 : vector<128xf32> to vector<1x128xf32>
    %cst_15 = arith.constant 0.001953125 : f32
    %16 = vector.broadcast %cst_15 : f32 to vector<1x128xf32>
    %17 = arith.mulf %11, %16 : vector<1x128xf32>
    %cst_16 = arith.constant 0.001953125 : f32
    %18 = vector.broadcast %cst_16 : f32 to vector<1x128xf32>
    %19 = arith.mulf %15, %18 : vector<1x128xf32>
    %20 = arith.mulf %17, %17 : vector<1x128xf32>
    %21 = arith.subf %19, %20 : vector<1x128xf32>
    %c0_17 = arith.constant 0 : index
    %c0_18 = arith.constant 0 : index
    %22 = vector.load %arg5[%c0_17, %c0_18] : memref<1x128xf32, #tpu.memory_space<vmem>>, vector<1x128xf32>
    %cst_19 = arith.constant 9.99999974E-6 : f32
    %23 = vector.broadcast %cst_19 : f32 to vector<1x128xf32>
    %24 = arith.addf %21, %23 : vector<1x128xf32>
    %25 = math.rsqrt %24 : vector<1x128xf32>
    %26 = arith.mulf %22, %25 : vector<1x128xf32>
    %c0_20 = arith.constant 0 : index
    %c0_21 = arith.constant 0 : index
    %27 = vector.load %arg6[%c0_20, %c0_21] : memref<1x128xf32, #tpu.memory_space<vmem>>, vector<1x128xf32>
    %28 = arith.mulf %17, %26 : vector<1x128xf32>
    %29 = arith.subf %27, %28 : vector<1x128xf32>
    %30 = vector.broadcast %26 : vector<1x128xf32> to vector<32x128xf32>
    %31 = arith.mulf %8, %30 : vector<32x128xf32>
    %32 = vector.broadcast %29 : vector<1x128xf32> to vector<32x128xf32>
    %33 = arith.addf %31, %32 : vector<32x128xf32>
    %cst_22 = arith.constant 0.000000e+00 : f32
    %34 = vector.broadcast %cst_22 : f32 to vector<32x128xf32>
    %35 = arith.maximumf %33, %34 : vector<32x128xf32>
    %cst_23 = arith.constant dense<0.000000e+00> : vector<32x128xf32>
    %36 = tpu.matmul %1, %35, %cst_23 {dimension_numbers = #tpu.dot_dimension_numbers<[1], [0], [0], [1], [0, 0, 1, 1], [], []>} : vector<32x32xf32>, vector<32x128xf32>, vector<32x128xf32> -> vector<32x128xf32>
    %cst_24 = arith.constant dense<0.000000e+00> : vector<32x128xf32>
    %37 = tpu.matmul %2, %35, %cst_24 {dimension_numbers = #tpu.dot_dimension_numbers<[1], [0], [0], [1], [0, 0, 1, 1], [], []>} : vector<32x32xf32>, vector<32x128xf32>, vector<32x128xf32> -> vector<32x128xf32>
    %38 = tpu.concatenate %36, %35, %37 in 1 : vector<32x128xf32>, vector<32x128xf32>, vector<32x128xf32> -> vector<32x384xf32>
    %c0_25 = arith.constant 0 : index
    %c0_26 = arith.constant 0 : index
    %39 = vector.load %arg7[%c0_25, %c0_26] : memref<384x128xf32, #tpu.memory_space<vmem>>, vector<384x128xf32>
    %cst_27 = arith.constant dense<0.000000e+00> : vector<32x128xf32>
    %40 = tpu.matmul %38, %39, %cst_27 {dimension_numbers = #tpu.dot_dimension_numbers<[1], [0], [0], [1], [0, 0, 1, 1], [], []>} : vector<32x384xf32>, vector<384x128xf32>, vector<32x128xf32> -> vector<32x128xf32>
    %cst_28 = arith.constant dense<0.000000e+00> : vector<32x128xf32>
    %41 = tpu.matmul %40, %3, %cst_28 {dimension_numbers = #tpu.dot_dimension_numbers<[1], [0], [0], [1], [0, 0, 1, 1], [], []>} : vector<32x128xf32>, vector<128x128xf32>, vector<32x128xf32> -> vector<32x128xf32>
    %cst_29 = arith.constant dense<0.000000e+00> : vector<128xf32>
    %42 = vector.multi_reduction <add>, %41, %cst_29 [0] : vector<32x128xf32> to vector<128xf32>
    %43 = vector.shape_cast %42 : vector<128xf32> to vector<1x128xf32>
    %44 = arith.mulf %40, %40 : vector<32x128xf32>
    %cst_30 = arith.constant dense<0.000000e+00> : vector<32x128xf32>
    %45 = tpu.matmul %44, %3, %cst_30 {dimension_numbers = #tpu.dot_dimension_numbers<[1], [0], [0], [1], [0, 0, 1, 1], [], []>} : vector<32x128xf32>, vector<128x128xf32>, vector<32x128xf32> -> vector<32x128xf32>
    %cst_31 = arith.constant dense<0.000000e+00> : vector<128xf32>
    %46 = vector.multi_reduction <add>, %45, %cst_31 [0] : vector<32x128xf32> to vector<128xf32>
    %47 = vector.shape_cast %46 : vector<128xf32> to vector<1x128xf32>
    %cst_32 = arith.constant 0.001953125 : f32
    %48 = vector.broadcast %cst_32 : f32 to vector<1x128xf32>
    %49 = arith.mulf %43, %48 : vector<1x128xf32>
    %cst_33 = arith.constant 0.001953125 : f32
    %50 = vector.broadcast %cst_33 : f32 to vector<1x128xf32>
    %51 = arith.mulf %47, %50 : vector<1x128xf32>
    %52 = arith.mulf %49, %49 : vector<1x128xf32>
    %53 = arith.subf %51, %52 : vector<1x128xf32>
    %c0_34 = arith.constant 0 : index
    %c0_35 = arith.constant 0 : index
    %54 = vector.load %arg8[%c0_34, %c0_35] : memref<1x128xf32, #tpu.memory_space<vmem>>, vector<1x128xf32>
    %cst_36 = arith.constant 9.99999974E-6 : f32
    %55 = vector.broadcast %cst_36 : f32 to vector<1x128xf32>
    %56 = arith.addf %53, %55 : vector<1x128xf32>
    %57 = math.rsqrt %56 : vector<1x128xf32>
    %58 = arith.mulf %54, %57 : vector<1x128xf32>
    %c0_37 = arith.constant 0 : index
    %c0_38 = arith.constant 0 : index
    %59 = vector.load %arg9[%c0_37, %c0_38] : memref<1x128xf32, #tpu.memory_space<vmem>>, vector<1x128xf32>
    %60 = arith.mulf %49, %58 : vector<1x128xf32>
    %61 = arith.subf %59, %60 : vector<1x128xf32>
    %62 = vector.broadcast %58 : vector<1x128xf32> to vector<32x128xf32>
    %63 = arith.mulf %40, %62 : vector<32x128xf32>
    %64 = vector.broadcast %61 : vector<1x128xf32> to vector<32x128xf32>
    %65 = arith.addf %63, %64 : vector<32x128xf32>
    %66 = arith.addf %0, %65 : vector<32x128xf32>
    %c0_39 = arith.constant 0 : index
    %c0_40 = arith.constant 0 : index
    %67 = vector.load %arg11[%c0_39, %c0_40] : memref<32x128xf32, #tpu.memory_space<vmem>>, vector<32x128xf32>
    tpu.vector_store %arg11[%c0_39, %c0_40], %66 {strides = array<i32>} : memref<32x128xf32, #tpu.memory_space<vmem>>, vector<32x128xf32>,
    return
  }
  func.func @transform_0(%arg0: i32) -> (i32, i32) {
    %c0_i32 = arith.constant 0 : i32
    %c0_i32_0 = arith.constant 0 : i32
    %c0_i32_1 = arith.constant 0 : i32
    return %c0_i32, %c0_i32_0 : i32, i32
  }
  func.func @transform_1(%arg0: i32) -> (i32, i32) {
    %c0_i32 = arith.constant 0 : i32
    %c0_i32_0 = arith.constant 0 : i32
    %c0_i32_1 = arith.constant 0 : i32
    return %c0_i32, %c0_i32_0 : i32, i32
  }
  func.func @transform_2(%arg0: i32) -> (i32, i32) {
    %c0_i32 = arith.constant 0 : i32
    %c0_i32_0 = arith.constant 0 : i32
    %c0_i32_1 = arith.constant 0 : i32
    return %c0_i32, %c0_i32_0 : i32, i32
  }
  func.func @transform_3(%arg0: i32) -> (i32, i32) {
    %c0_i32 = arith.constant 0 : i32
    %c0_i32_0 = arith.constant 0 : i32
    %c0_i32_1 = arith.constant 0 : i32
    return %c0_i32, %c0_i32_0 : i32, i32
  }
  func.func @transform_4(%arg0: i32) -> (i32, i32) {
    %c0_i32 = arith.constant 0 : i32
    %c0_i32_0 = arith.constant 0 : i32
    %c0_i32_1 = arith.constant 0 : i32
    return %c0_i32, %c0_i32_0 : i32, i32
  }
  func.func @transform_5(%arg0: i32) -> (i32, i32) {
    %c0_i32 = arith.constant 0 : i32
    %c0_i32_0 = arith.constant 0 : i32
    %c0_i32_1 = arith.constant 0 : i32
    return %c0_i32, %c0_i32_0 : i32, i32
  }
  func.func @transform_6(%arg0: i32) -> (i32, i32) {
    %c0_i32 = arith.constant 0 : i32
    %c0_i32_0 = arith.constant 0 : i32
    %c0_i32_1 = arith.constant 0 : i32
    return %c0_i32, %c0_i32_0 : i32, i32
  }
  func.func @transform_7(%arg0: i32) -> (i32, i32) {
    %c0_i32 = arith.constant 0 : i32
    %c0_i32_0 = arith.constant 0 : i32
    %c0_i32_1 = arith.constant 0 : i32
    return %c0_i32, %c0_i32_0 : i32, i32
  }
  func.func @transform_8(%arg0: i32) -> (i32, i32) {
    %c0_i32 = arith.constant 0 : i32
    %c0_i32_0 = arith.constant 0 : i32
    %c0_i32_1 = arith.constant 0 : i32
    return %c0_i32, %c0_i32_0 : i32, i32
  }
  func.func @transform_9(%arg0: i32) -> (i32, i32) {
    %c0_i32 = arith.constant 0 : i32
    %c0_i32_0 = arith.constant 0 : i32
    %c0_i32_1 = arith.constant 0 : i32
    return %c0_i32, %c0_i32_0 : i32, i32
  }
  func.func @transform_10(%arg0: i32) -> (i32, i32) {
    %c0_i32 = arith.constant 0 : i32
    %c0_i32_0 = arith.constant 0 : i32
    %c0_i32_1 = arith.constant 0 : i32
    return %c0_i32, %c0_i32_0 : i32, i32
  }
}

</mosaic_0001>

<llo_original>
// kernel: tpu_custom_call.1
$region0: #{tpu_custom_call.1}
  #allocation0 [shape = 'u32[]', space=smem, size = 0x4, offset = 0x4, fixed_abs, tag = 'smem constant byte address 0x4 - core index']
  #allocation1 [shape = 'u32[144,128]{1,0:T(1,128)}', space=vmem, size = 0x12000, scoped, tag = 'internal scratch']
  %s0 = inlined_call_operand.hbm [shape: f32[32,128], index: 0, kind: input, shape index: {}]
  %s1 = inlined_call_operand.hbm [shape: f32[32,32], index: 1, kind: input, shape index: {}]
  %s2 = inlined_call_operand.hbm [shape: f32[32,32], index: 2, kind: input, shape index: {}]
  %s3 = inlined_call_operand.hbm [shape: f32[384,128], index: 3, kind: input, shape index: {}]
  %s4 = inlined_call_operand.vmem [shape: f32[1,128], index: 4, kind: input, shape index: {}]
  %s5 = inlined_call_operand.vmem [shape: f32[1,128], index: 5, kind: input, shape index: {}]
  %s6 = inlined_call_operand.hbm [shape: f32[384,128], index: 6, kind: input, shape index: {}]
  %s7 = inlined_call_operand.vmem [shape: f32[1,128], index: 7, kind: input, shape index: {}]
  %s8 = inlined_call_operand.vmem [shape: f32[1,128], index: 8, kind: input, shape index: {}]
  %s9 = inlined_call_operand.hbm [shape: f32[128,128], index: 9, kind: input, shape index: {}]
  %s10 = inlined_call_operand.hbm [shape: f32[32,128], index: 10, kind: output, shape index: {}]
  %s11 = sld [smem:[#allocation0]]
  $region74: #{tpu_custom_call.1} parent=0
    _
  %s13 = ssub.s32 1, %s11
  %s14 = scalar_select 0, %s13, %s11
  $region1: #{tpu_custom_call.1} parent=0
    #allocation2 [shape = 'u8[16384]{0}', space=vmem, size = 0x4000, scoped, tag = 'input window, operand 0, single buffered']
    #allocation3 [shape = 's32[1]{0}', space=sflag, size = 0x4, scoped, tag = 'scoped memory for tpu_custom_call.1']
    #allocation4 [shape = 's32[1]{0}', space=sflag, size = 0x4, scoped, tag = 'scoped memory for tpu_custom_call.1']
    #allocation5 [shape = 'u8[16384]{0}', space=vmem, size = 0x4000, scoped, tag = 'input window, operand 1, single buffered']
    #allocation6 [shape = 's32[1]{0}', space=sflag, size = 0x4, scoped, tag = 'scoped memory for tpu_custom_call.1']
    #allocation7 [shape = 'u8[16384]{0}', space=vmem, size = 0x4000, scoped, tag = 'input window, operand 2, single buffered']
    #allocation8 [shape = 'u8[196608]{0}', space=vmem, size = 0x30000, scoped, tag = 'input window, operand 3, single buffered']
    #allocation9 [shape = 's32[1]{0}', space=sflag, size = 0x4, scoped, tag = 'scoped memory for tpu_custom_call.1']
    #allocation10 [shape = 'u8[196608]{0}', space=vmem, size = 0x30000, scoped, tag = 'input window, operand 6, single buffered']
    #allocation11 [shape = 'u8[65536]{0}', space=vmem, size = 0x10000, scoped, tag = 'input window, operand 9, single buffered']
    #allocation12 [shape = 's32[1]{0}', space=sflag, size = 0x4, scoped, tag = 'scoped memory for tpu_custom_call.1']
    #allocation13 [shape = 'u8[16384]{0}', space=vmem, size = 0x4000, scoped, tag = 'output window, operand 0, single buffered']
    %15 = vsyncpa [#allocation3], 0
    %16 = vsyncpa [#allocation6], 0
    %17 = vsyncpa [#allocation9], 0
    %18 = vsyncpa [#allocation12], 0
    %19 = vsyncpa [#allocation4], 0
    // Predicated region
    $region2: #{tpu_custom_call.1} parent=1 // pred_check
      _
    $region3: #{tpu_custom_call.1} parent=1 // pred_check_branch
      %21 = sbr.rel (0) target = $region5
    $region4: #{tpu_custom_call.1} parent=1 // pred_region
      %s23 = ssub.s32 512, 512
      %24 = vsyncadd [#allocation3], %s23
      %s25 = sshll.u32 [#allocation2], 4
      %s26 = int_to_ptr.vmem [resolvable:$true] %s25
      %31 = dma.hbm_to_vmem [thread:$0]  %s0, 512, %s26, [#allocation3], 128, 128, 8
    $region5: #{tpu_custom_call.1} parent=1 // pred_fallthru
      _
    // Predicated region
    $region6: #{tpu_custom_call.1} parent=1 // pred_check
      _
    $region7: #{tpu_custom_call.1} parent=1 // pred_check_branch
      %33 = sbr.rel (0) target = $region9
    $region8: #{tpu_custom_call.1} parent=1 // pred_region
      %s35 = ssub.s32 512, 512
      %36 = vsyncadd [#allocation6], %s35
      %s37 = sshll.u32 [#allocation5], 4
      %s38 = int_to_ptr.vmem [resolvable:$true] %s37
      %43 = dma.hbm_to_vmem [thread:$0]  %s1, 512, %s38, [#allocation6], 128, 128, 8
    $region9: #{tpu_custom_call.1} parent=1 // pred_fallthru
      _
    // Predicated region
    $region10: #{tpu_custom_call.1} parent=1 // pred_check
      _
    $region11: #{tpu_custom_call.1} parent=1 // pred_check_branch
      %45 = sbr.rel (0) target = $region13
    $region12: #{tpu_custom_call.1} parent=1 // pred_region
      %s47 = ssub.s32 512, 512
      %48 = vsyncadd [#allocation6], %s47
      %s49 = sshll.u32 [#allocation7], 4
      %s50 = int_to_ptr.vmem [resolvable:$true] %s49
      %55 = dma.hbm_to_vmem [thread:$0]  %s2, 512, %s50, [#allocation6], 128, 128, 8
    $region13: #{tpu_custom_call.1} parent=1 // pred_fallthru
      _
    // Predicated region
    $region14: #{tpu_custom_call.1} parent=1 // pred_check
      _
    $region15: #{tpu_custom_call.1} parent=1 // pred_check_branch
      %57 = sbr.rel (0) target = $region17
    $region16: #{tpu_custom_call.1} parent=1 // pred_region
      %s59 = ssub.s32 6144, 6144
      %60 = vsyncadd [#allocation9], %s59
      %s61 = sshll.u32 [#allocation8], 4
      %s62 = int_to_ptr.vmem [resolvable:$true] %s61
      %67 = dma.hbm_to_vmem [thread:$0]  %s3, 6144, %s62, [#allocation9], 128, 128, 8
    $region17: #{tpu_custom_call.1} parent=1 // pred_fallthru
      _
    // Predicated region
    $region18: #{tpu_custom_call.1} parent=1 // pred_check
      _
    $region19: #{tpu_custom_call.1} parent=1 // pred_check_branch
      %69 = sbr.rel (0) target = $region21
    $region20: #{tpu_custom_call.1} parent=1 // pred_region
      _
    $region21: #{tpu_custom_call.1} parent=1 // pred_fallthru
      _
    // Predicated region
    $region22: #{tpu_custom_call.1} parent=1 // pred_check
      _
    $region23: #{tpu_custom_call.1} parent=1 // pred_check_branch
      %71 = sbr.rel (0) target = $region25
    $region24: #{tpu_custom_call.1} parent=1 // pred_region
      _
    $region25: #{tpu_custom_call.1} parent=1 // pred_fallthru
      _
    // Predicated region
    $region26: #{tpu_custom_call.1} parent=1 // pred_check
      _
    $region27: #{tpu_custom_call.1} parent=1 // pred_check_branch
      %73 = sbr.rel (0) target = $region29
    $region28: #{tpu_custom_call.1} parent=1 // pred_region
      %s75 = ssub.s32 6144, 6144
      %76 = vsyncadd [#allocation9], %s75
      %s77 = sshll.u32 [#allocation10], 4
      %s78 = int_to_ptr.vmem [resolvable:$true] %s77
      %83 = dma.hbm_to_vmem [thread:$0]  %s6, 6144, %s78, [#allocation9], 128, 128, 8
    $region29: #{tpu_custom_call.1} parent=1 // pred_fallthru
      _
    // Predicated region
    $region30: #{tpu_custom_call.1} parent=1 // pred_check
      _
    $region31: #{tpu_custom_call.1} parent=1 // pred_check_branch
      %85 = sbr.rel (0) target = $region33
    $region32: #{tpu_custom_call.1} parent=1 // pred_region
      _
    $region33: #{tpu_custom_call.1} parent=1 // pred_fallthru
      _
    // Predicated region
    $region34: #{tpu_custom_call.1} parent=1 // pred_check
      _
    $region35: #{tpu_custom_call.1} parent=1 // pred_check_branch
      %87 = sbr.rel (0) target = $region37
    $region36: #{tpu_custom_call.1} parent=1 // pred_region
      _
    $region37: #{tpu_custom_call.1} parent=1 // pred_fallthru
      _
    // Predicated region
    $region38: #{tpu_custom_call.1} parent=1 // pred_check
      _
    $region39: #{tpu_custom_call.1} parent=1 // pred_check_branch
      %89 = sbr.rel (0) target = $region41
    $region40: #{tpu_custom_call.1} parent=1 // pred_region
      %s91 = ssub.s32 2048, 2048
      %92 = vsyncadd [#allocation12], %s91
      %s93 = sshll.u32 [#allocation11], 4
      %s94 = int_to_ptr.vmem [resolvable:$true] %s93
      %99 = dma.hbm_to_vmem [thread:$0]  %s9, 2048, %s94, [#allocation12], 128, 128, 8
    $region41: #{tpu_custom_call.1} parent=1 // pred_fallthru
      _
    // Predicated region
    $region42: #{tpu_custom_call.1} parent=1 // pred_check
      _
    $region43: #{tpu_custom_call.1} parent=1 // pred_check_branch
      %101 = sbr.rel (0) target = $region45
    $region44: #{tpu_custom_call.1} parent=1 // pred_region
      %102 = dma.done [#allocation3], 512
    $region45: #{tpu_custom_call.1} parent=1 // pred_fallthru
      _
    // Predicated region
    $region46: #{tpu_custom_call.1} parent=1 // pred_check
      _
    $region47: #{tpu_custom_call.1} parent=1 // pred_check_branch
      %104 = sbr.rel (0) target = $region49
    $region48: #{tpu_custom_call.1} parent=1 // pred_region
      %105 = dma.done [#allocation6], 512
    $region49: #{tpu_custom_call.1} parent=1 // pred_fallthru
      _
    // Predicated region
    $region50: #{tpu_custom_call.1} parent=1 // pred_check
      _
    $region51: #{tpu_custom_call.1} parent=1 // pred_check_branch
      %107 = sbr.rel (0) target = $region53
    $region52: #{tpu_custom_call.1} parent=1 // pred_region
      %108 = dma.done [#allocation6], 512
    $region53: #{tpu_custom_call.1} parent=1 // pred_fallthru
      _
    // Predicated region
    $region54: #{tpu_custom_call.1} parent=1 // pred_check
      _
    $region55: #{tpu_custom_call.1} parent=1 // pred_check_branch
      %110 = sbr.rel (0) target = $region57
    $region56: #{tpu_custom_call.1} parent=1 // pred_region
      %111 = dma.done [#allocation9], 6144
    $region57: #{tpu_custom_call.1} parent=1 // pred_fallthru
      _
    // Predicated region
    $region58: #{tpu_custom_call.1} parent=1 // pred_check
      _
    $region59: #{tpu_custom_call.1} parent=1 // pred_check_branch
      %113 = sbr.rel (0) target = $region61
    $region60: #{tpu_custom_call.1} parent=1 // pred_region
      %114 = dma.done [#allocation9], 6144
    $region61: #{tpu_custom_call.1} parent=1 // pred_fallthru
      _
    // Predicated region
    $region62: #{tpu_custom_call.1} parent=1 // pred_check
      _
    $region63: #{tpu_custom_call.1} parent=1 // pred_check_branch
      %116 = sbr.rel (0) target = $region65
    $region64: #{tpu_custom_call.1} parent=1 // pred_region
      %117 = dma.done [#allocation12], 2048
    $region65: #{tpu_custom_call.1} parent=1 // pred_fallthru
      _
    %v118 = vld [vmem:[#allocation2] sm:$0xff]
    %v119 = vld [vmem:[#allocation2 + $0x8] sm:$0xff]
    %v120 = vld [vmem:[#allocation2 + $0x10] sm:$0xff]
    %v121 = vld [vmem:[#allocation2 + $0x18] sm:$0xff]
    %v122 = vld [vmem:[#allocation5] sm:$0xff]
    %v123 = vld [vmem:[#allocation5 + $0x8] sm:$0xff]
    %v124 = vld [vmem:[#allocation5 + $0x10] sm:$0xff]
    %v125 = vld [vmem:[#allocation5 + $0x18] sm:$0xff]
    %v126 = vld [vmem:[#allocation7] sm:$0xff]
    %v127 = vld [vmem:[#allocation7 + $0x8] sm:$0xff]
    %v128 = vld [vmem:[#allocation7 + $0x10] sm:$0xff]
    %v129 = vld [vmem:[#allocation7 + $0x18] sm:$0xff]
    %v130 = vld [vmem:[#allocation11] sm:$0xff]
    %v131 = vld [vmem:[#allocation11 + $0x8] sm:$0xff]
    %v132 = vld [vmem:[#allocation11 + $0x10] sm:$0xff]
    %v133 = vld [vmem:[#allocation11 + $0x18] sm:$0xff]
    %v134 = vld [vmem:[#allocation11 + $0x20] sm:$0xff]
    %v135 = vld [vmem:[#allocation11 + $0x28] sm:$0xff]
    %v136 = vld [vmem:[#allocation11 + $0x30] sm:$0xff]
    %v137 = vld [vmem:[#allocation11 + $0x38] sm:$0xff]
    %v138 = vld [vmem:[#allocation11 + $0x40] sm:$0xff]
    %v139 = vld [vmem:[#allocation11 + $0x48] sm:$0xff]
    %v140 = vld [vmem:[#allocation11 + $0x50] sm:$0xff]
    %v141 = vld [vmem:[#allocation11 + $0x58] sm:$0xff]
    %v142 = vld [vmem:[#allocation11 + $0x60] sm:$0xff]
    %v143 = vld [vmem:[#allocation11 + $0x68] sm:$0xff]
    %v144 = vld [vmem:[#allocation11 + $0x70] sm:$0xff]
    %v145 = vld [vmem:[#allocation11 + $0x78] sm:$0xff]
    %vm146 = vcmask 261120
    %v148 = vsel %vm146, %v122, 0
    %v151 = vsel %vm146, %v123, 0
    %v154 = vsel %vm146, %v124, 0
    %v157 = vsel %vm146, %v125, 0
    %159 = vmatprep.subr.mxu0 0.0
    %160 = vmatpush1.msra.mxu0 0.0
    %161 = vmatprep.subr.mxu0 0.0
    %162 = vmatpush1.msra.mxu0 0.0
    %163 = vmatprep.subr.mxu0 0.0
    %164 = vmatpush1.msra.mxu0 0.0
    %165 = vmatprep.subr.mxu0 0.0
    %166 = vmatpush1.msra.mxu0 0.0
    %167 = vmatprep.subr.mxu0 0.0
    %168 = vmatpush1.msra.mxu0 0.0
    %169 = vmatprep.subr.mxu0 0.0
    %170 = vmatpush1.msra.mxu0 0.0
    %171 = vmatprep.subr.mxu0 0.0
    %172 = vmatpush1.msra.mxu0 0.0
    %173 = vmatprep.subr.mxu0 0.0
    %174 = vmatpush1.msra.mxu0 0.0
    %175 = vmatprep.subr.mxu0 0.0
    %176 = vmatpush1.msra.mxu0 0.0
    %177 = vmatprep.subr.mxu0 0.0
    %178 = vmatpush1.msra.mxu0 0.0
    %179 = vmatprep.subr.mxu0 0.0
    %180 = vmatpush1.msra.mxu0 0.0
    %181 = vmatprep.subr.mxu0 0.0
    %182 = vmatpush1.msra.mxu0 0.0
    %183 = vmatprep.subr.mxu0 0.0
    %184 = vmatpush1.msra.mxu0 %v121
    %185 = vmatprep.subr.mxu0 0.0
    %186 = vmatpush1.msra.mxu0 %v120
    %187 = vmatprep.subr.mxu0 0.0
    %188 = vmatpush1.msra.mxu0 %v119
    %189 = vmatprep.subr.mxu0 0.0
    %190 = vmatpush1.msra.mxu0 %v118
    %191 = vmatprep.subr.mxu0 0.0
    %192 = vmatpush2.msra.mxu0 0.0
    %193 = vmatprep.subr.mxu0 0.0
    %194 = vmatpush2.msra.mxu0 0.0
    %195 = vmatprep.subr.mxu0 0.0
    %196 = vmatpush2.msra.mxu0 0.0
    %197 = vmatprep.subr.mxu0 0.0
    %198 = vmatpush2.msra.mxu0 0.0
    %199 = vmatprep.subr.mxu0 0.0
    %200 = vmatpush2.msra.mxu0 0.0
    %201 = vmatprep.subr.mxu0 0.0
    %202 = vmatpush2.msra.mxu0 0.0
    %203 = vmatprep.subr.mxu0 0.0
    %204 = vmatpush2.msra.mxu0 0.0
    %205 = vmatprep.subr.mxu0 0.0
    %206 = vmatpush2.msra.mxu0 0.0
    %207 = vmatprep.subr.mxu0 0.0
    %208 = vmatpush2.msra.mxu0 0.0
    %209 = vmatprep.subr.mxu0 0.0
    %210 = vmatpush2.msra.mxu0 0.0
    %211 = vmatprep.subr.mxu0 0.0
    %212 = vmatpush2.msra.mxu0 0.0
    %213 = vmatprep.subr.mxu0 0.0
    %214 = vmatpush2.msra.mxu0 0.0
    %215 = vmatprep.subr.mxu0 0.0
    %216 = vmatpush2.msra.mxu0 0.0
    %217 = vmatprep.subr.mxu0 0.0
    %218 = vmatpush2.msra.mxu0 0.0
    %219 = vmatprep.subr.mxu0 0.0
    %220 = vmatpush2.msra.mxu0 0.0
    %221 = vmatprep.subr.mxu0 0.0
    %222 = vmatpush2.msra.mxu0 0.0
    %223 = vmatprep.mubr.f32.mxu0 0.0
    %224 = vmatmul.mubr.f32.gmra.mxu0 %v148
    %v225 = vpop.f32.mrf.mxu0
    %v226 = vadd.f32 0.0, %v225
    %v227 = vpop.f32.mrf.mxu0
    %228 = vmatprep.mubr.f32.mxu0 0.0
    %229 = vmatmul.mubr.f32.gmra.mxu0 %v151
    %v230 = vpop.f32.mrf.mxu0
    %v231 = vadd.f32 0.0, %v230
    %v232 = vpop.f32.mrf.mxu0
    %233 = vmatprep.mubr.f32.mxu0 0.0
    %234 = vmatmul.mubr.f32.gmra.mxu0 %v154
    %v235 = vpop.f32.mrf.mxu0
    %v236 = vadd.f32 0.0, %v235
    %v237 = vpop.f32.mrf.mxu0
    %238 = vmatprep.mubr.f32.mxu0 0.0
    %239 = vmatmul.mubr.f32.gmra.mxu0 %v157
    %v240 = vpop.f32.mrf.mxu0
    %v241 = vadd.f32 0.0, %v240
    %v242 = vpop.f32.mrf.mxu0
    %243 = vdwg.mxu0
    %v245 = vsel %vm146, %v126, 0
    %v248 = vsel %vm146, %v127, 0
    %v251 = vsel %vm146, %v128, 0
    %v254 = vsel %vm146, %v129, 0
    %256 = vmatprep.subr.mxu0 0.0
    %257 = vmatpush1.msra.mxu0 0.0
    %258 = vmatprep.subr.mxu0 0.0
    %259 = vmatpush1.msra.mxu0 0.0
    %260 = vmatprep.subr.mxu0 0.0
    %261 = vmatpush1.msra.mxu0 0.0
    %262 = vmatprep.subr.mxu0 0.0
    %263 = vmatpush1.msra.mxu0 0.0
    %264 = vmatprep.subr.mxu0 0.0
    %265 = vmatpush1.msra.mxu0 0.0
    %266 = vmatprep.subr.mxu0 0.0
    %267 = vmatpush1.msra.mxu0 0.0
    %268 = vmatprep.subr.mxu0 0.0
    %269 = vmatpush1.msra.mxu0 0.0
    %270 = vmatprep.subr.mxu0 0.0
    %271 = vmatpush1.msra.mxu0 0.0
    %272 = vmatprep.subr.mxu0 0.0
    %273 = vmatpush1.msra.mxu0 0.0
    %274 = vmatprep.subr.mxu0 0.0
    %275 = vmatpush1.msra.mxu0 0.0
    %276 = vmatprep.subr.mxu0 0.0
    %277 = vmatpush1.msra.mxu0 0.0
    %278 = vmatprep.subr.mxu0 0.0
    %279 = vmatpush1.msra.mxu0 0.0
    %280 = vmatprep.subr.mxu0 0.0
    %281 = vmatpush1.msra.mxu0 %v121
    %282 = vmatprep.subr.mxu0 0.0
    %283 = vmatpush1.msra.mxu0 %v120
    %284 = vmatprep.subr.mxu0 0.0
    %285 = vmatpush1.msra.mxu0 %v119
    %286 = vmatprep.subr.mxu0 0.0
    %287 = vmatpush1.msra.mxu0 %v118
    %288 = vmatprep.subr.mxu0 0.0
    %289 = vmatpush2.msra.mxu0 0.0
    %290 = vmatprep.subr.mxu0 0.0
    %291 = vmatpush2.msra.mxu0 0.0
    %292 = vmatprep.subr.mxu0 0.0
    %293 = vmatpush2.msra.mxu0 0.0
    %294 = vmatprep.subr.mxu0 0.0
    %295 = vmatpush2.msra.mxu0 0.0
    %296 = vmatprep.subr.mxu0 0.0
    %297 = vmatpush2.msra.mxu0 0.0
    %298 = vmatprep.subr.mxu0 0.0
    %299 = vmatpush2.msra.mxu0 0.0
    %300 = vmatprep.subr.mxu0 0.0
    %301 = vmatpush2.msra.mxu0 0.0
    %302 = vmatprep.subr.mxu0 0.0
    %303 = vmatpush2.msra.mxu0 0.0
    %304 = vmatprep.subr.mxu0 0.0
    %305 = vmatpush2.msra.mxu0 0.0
    %306 = vmatprep.subr.mxu0 0.0
    %307 = vmatpush2.msra.mxu0 0.0
    %308 = vmatprep.subr.mxu0 0.0
    %309 = vmatpush2.msra.mxu0 0.0
    %310 = vmatprep.subr.mxu0 0.0
    %311 = vmatpush2.msra.mxu0 0.0
    %312 = vmatprep.subr.mxu0 0.0
    %313 = vmatpush2.msra.mxu0 0.0
    %314 = vmatprep.subr.mxu0 0.0
    %315 = vmatpush2.msra.mxu0 0.0
    %316 = vmatprep.subr.mxu0 0.0
    %317 = vmatpush2.msra.mxu0 0.0
    %318 = vmatprep.subr.mxu0 0.0
    %319 = vmatpush2.msra.mxu0 0.0
    %320 = vmatprep.mubr.f32.mxu0 0.0
    %321 = vmatmul.mubr.f32.gmra.mxu0 %v245
    %v322 = vpop.f32.mrf.mxu0
    %v323 = vadd.f32 0.0, %v322
    %v324 = vpop.f32.mrf.mxu0
    %325 = vmatprep.mubr.f32.mxu0 0.0
    %326 = vmatmul.mubr.f32.gmra.mxu0 %v248
    %v327 = vpop.f32.mrf.mxu0
    %v328 = vadd.f32 0.0, %v327
    %v329 = vpop.f32.mrf.mxu0
    %330 = vmatprep.mubr.f32.mxu0 0.0
    %331 = vmatmul.mubr.f32.gmra.mxu0 %v251
    %v332 = vpop.f32.mrf.mxu0
    %v333 = vadd.f32 0.0, %v332
    %v334 = vpop.f32.mrf.mxu0
    %335 = vmatprep.mubr.f32.mxu0 0.0
    %336 = vmatmul.mubr.f32.gmra.mxu0 %v254
    %v337 = vpop.f32.mrf.mxu0
    %v338 = vadd.f32 0.0, %v337
    %v339 = vpop.f32.mrf.mxu0
    %340 = vdwg.mxu0
    %v341 = vld [vmem:[#allocation8] sm:$0xff]
    %v342 = vld [vmem:[#allocation8 + $0x8] sm:$0xff]
    %v343 = vld [vmem:[#allocation8 + $0x10] sm:$0xff]
    %v344 = vld [vmem:[#allocation8 + $0x18] sm:$0xff]
    %v345 = vld [vmem:[#allocation8 + $0x20] sm:$0xff]
    %v346 = vld [vmem:[#allocation8 + $0x28] sm:$0xff]
    %v347 = vld [vmem:[#allocation8 + $0x30] sm:$0xff]
    %v348 = vld [vmem:[#allocation8 + $0x38] sm:$0xff]
    %v349 = vld [vmem:[#allocation8 + $0x40] sm:$0xff]
    %v350 = vld [vmem:[#allocation8 + $0x48] sm:$0xff]
    %v351 = vld [vmem:[#allocation8 + $0x50] sm:$0xff]
    %v352 = vld [vmem:[#allocation8 + $0x58] sm:$0xff]
    %v353 = vld [vmem:[#allocation8 + $0x60] sm:$0xff]
    %v354 = vld [vmem:[#allocation8 + $0x68] sm:$0xff]
    %v355 = vld [vmem:[#allocation8 + $0x70] sm:$0xff]
    %v356 = vld [vmem:[#allocation8 + $0x78] sm:$0xff]
    %v357 = vld [vmem:[#allocation8 + $0x80] sm:$0xff]
    %v358 = vld [vmem:[#allocation8 + $0x88] sm:$0xff]
    %v359 = vld [vmem:[#allocation8 + $0x90] sm:$0xff]
    %v360 = vld [vmem:[#allocation8 + $0x98] sm:$0xff]
    %v361 = vld [vmem:[#allocation8 + $0xa0] sm:$0xff]
    %v362 = vld [vmem:[#allocation8 + $0xa8] sm:$0xff]
    %v363 = vld [vmem:[#allocation8 + $0xb0] sm:$0xff]
    %v364 = vld [vmem:[#allocation8 + $0xb8] sm:$0xff]
    %v365 = vld [vmem:[#allocation8 + $0xc0] sm:$0xff]
    %v366 = vld [vmem:[#allocation8 + $0xc8] sm:$0xff]
    %v367 = vld [vmem:[#allocation8 + $0xd0] sm:$0xff]
    %v368 = vld [vmem:[#allocation8 + $0xd8] sm:$0xff]
    %v369 = vld [vmem:[#allocation8 + $0xe0] sm:$0xff]
    %v370 = vld [vmem:[#allocation8 + $0xe8] sm:$0xff]
    %v371 = vld [vmem:[#allocation8 + $0xf0] sm:$0xff]
    %v372 = vld [vmem:[#allocation8 + $0xf8] sm:$0xff]
    %v373 = vld [vmem:[#allocation8 + $0x100] sm:$0xff]
    %v374 = vld [vmem:[#allocation8 + $0x108] sm:$0xff]
    %v375 = vld [vmem:[#allocation8 + $0x110] sm:$0xff]
    %v376 = vld [vmem:[#allocation8 + $0x118] sm:$0xff]
    %v377 = vld [vmem:[#allocation8 + $0x120] sm:$0xff]
    %v378 = vld [vmem:[#allocation8 + $0x128] sm:$0xff]
    %v379 = vld [vmem:[#allocation8 + $0x130] sm:$0xff]
    %v380 = vld [vmem:[#allocation8 + $0x138] sm:$0xff]
    %v381 = vld [vmem:[#allocation8 + $0x140] sm:$0xff]
    %v382 = vld [vmem:[#allocation8 + $0x148] sm:$0xff]
    %v383 = vld [vmem:[#allocation8 + $0x150] sm:$0xff]
    %v384 = vld [vmem:[#allocation8 + $0x158] sm:$0xff]
    %v385 = vld [vmem:[#allocation8 + $0x160] sm:$0xff]
    %v386 = vld [vmem:[#allocation8 + $0x168] sm:$0xff]
    %v387 = vld [vmem:[#allocation8 + $0x170] sm:$0xff]
    %v388 = vld [vmem:[#allocation8 + $0x178] sm:$0xff]
    %389 = vmatprep.subr.mxu0 0.0
    %390 = vmatpush1.msra.mxu0 %v356
    %391 = vmatprep.subr.mxu0 0.0
    %392 = vmatpush1.msra.mxu0 %v355
    %393 = vmatprep.subr.mxu0 0.0
    %394 = vmatpush1.msra.mxu0 %v354
    %395 = vmatprep.subr.mxu0 0.0
    %396 = vmatpush1.msra.mxu0 %v353
    %397 = vmatprep.subr.mxu0 0.0
    %398 = vmatpush1.msra.mxu0 %v352
    %399 = vmatprep.subr.mxu0 0.0
    %400 = vmatpush1.msra.mxu0 %v351
    %401 = vmatprep.subr.mxu0 0.0
    %402 = vmatpush1.msra.mxu0 %v350
    %403 = vmatprep.subr.mxu0 0.0
    %404 = vmatpush1.msra.mxu0 %v349
    %405 = vmatprep.subr.mxu0 0.0
    %406 = vmatpush1.msra.mxu0 %v348
    %407 = vmatprep.subr.mxu0 0.0
    %408 = vmatpush1.msra.mxu0 %v347
    %409 = vmatprep.subr.mxu0 0.0
    %410 = vmatpush1.msra.mxu0 %v346
    %411 = vmatprep.subr.mxu0 0.0
    %412 = vmatpush1.msra.mxu0 %v345
    %413 = vmatprep.subr.mxu0 0.0
    %414 = vmatpush1.msra.mxu0 %v344
    %415 = vmatprep.subr.mxu0 0.0
    %416 = vmatpush1.msra.mxu0 %v343
    %417 = vmatprep.subr.mxu0 0.0
    %418 = vmatpush1.msra.mxu0 %v342
    %419 = vmatprep.subr.mxu0 0.0
    %420 = vmatpush1.msra.mxu0 %v341
    %421 = vmatprep.subr.mxu0 0.0
    %422 = vmatpush2.msra.mxu0 %v372
    %423 = vmatprep.subr.mxu0 0.0
    %424 = vmatpush2.msra.mxu0 %v371
    %425 = vmatprep.subr.mxu0 0.0
    %426 = vmatpush2.msra.mxu0 %v370
    %427 = vmatprep.subr.mxu0 0.0
    %428 = vmatpush2.msra.mxu0 %v369
    %429 = vmatprep.subr.mxu0 0.0
    %430 = vmatpush2.msra.mxu0 %v368
    %431 = vmatprep.subr.mxu0 0.0
    %432 = vmatpush2.msra.mxu0 %v367
    %433 = vmatprep.subr.mxu0 0.0
    %434 = vmatpush2.msra.mxu0 %v366
    %435 = vmatprep.subr.mxu0 0.0
    %436 = vmatpush2.msra.mxu0 %v365
    %437 = vmatprep.subr.mxu0 0.0
    %438 = vmatpush2.msra.mxu0 %v364
    %439 = vmatprep.subr.mxu0 0.0
    %440 = vmatpush2.msra.mxu0 %v363
    %441 = vmatprep.subr.mxu0 0.0
    %442 = vmatpush2.msra.mxu0 %v362
    %443 = vmatprep.subr.mxu0 0.0
    %444 = vmatpush2.msra.mxu0 %v361
    %445 = vmatprep.subr.mxu0 0.0
    %446 = vmatpush2.msra.mxu0 %v360
    %447 = vmatprep.subr.mxu0 0.0
    %448 = vmatpush2.msra.mxu0 %v359
    %449 = vmatprep.subr.mxu0 0.0
    %450 = vmatpush2.msra.mxu0 %v358
    %451 = vmatprep.subr.mxu0 0.0
    %452 = vmatpush2.msra.mxu0 %v357
    %453 = vmatprep.mubr.f32.mxu0 %v118
    %454 = vmatmul.mubr.f32.gmra.mxu0 %v226
    %v455 = vpop.f32.mrf.mxu0
    %v456 = vadd.f32 0.0, %v455
    %v457 = vpop.f32.mrf.mxu0
    %458 = vmatprep.mubr.f32.mxu0 %v119
    %459 = vmatmul.mubr.f32.gmra.mxu0 %v231
    %v460 = vpop.f32.mrf.mxu0
    %v461 = vadd.f32 0.0, %v460
    %v462 = vpop.f32.mrf.mxu0
    %463 = vmatprep.mubr.f32.mxu0 %v120
    %464 = vmatmul.mubr.f32.gmra.mxu0 %v236
    %v465 = vpop.f32.mrf.mxu0
    %v466 = vadd.f32 0.0, %v465
    %v467 = vpop.f32.mrf.mxu0
    %468 = vmatprep.mubr.f32.mxu0 %v121
    %469 = vmatmul.mubr.f32.gmra.mxu0 %v241
    %v470 = vpop.f32.mrf.mxu0
    %v471 = vadd.f32 0.0, %v470
    %v472 = vpop.f32.mrf.mxu0
    %473 = vdwg.mxu0
    %474 = vmatprep.subr.mxu0 0.0
    %475 = vmatpush1.msra.mxu0 %v388
    %476 = vmatprep.subr.mxu0 0.0
    %477 = vmatpush1.msra.mxu0 %v387
    %478 = vmatprep.subr.mxu0 0.0
    %479 = vmatpush1.msra.mxu0 %v386
    %480 = vmatprep.subr.mxu0 0.0
    %481 = vmatpush1.msra.mxu0 %v385
    %482 = vmatprep.subr.mxu0 0.0
    %483 = vmatpush1.msra.mxu0 %v384
    %484 = vmatprep.subr.mxu0 0.0
    %485 = vmatpush1.msra.mxu0 %v383
    %486 = vmatprep.subr.mxu0 0.0
    %487 = vmatpush1.msra.mxu0 %v382
    %488 = vmatprep.subr.mxu0 0.0
    %489 = vmatpush1.msra.mxu0 %v381
    %490 = vmatprep.subr.mxu0 0.0
    %491 = vmatpush1.msra.mxu0 %v380
    %492 = vmatprep.subr.mxu0 0.0
    %493 = vmatpush1.msra.mxu0 %v379
    %494 = vmatprep.subr.mxu0 0.0
    %495 = vmatpush1.msra.mxu0 %v378
    %496 = vmatprep.subr.mxu0 0.0
    %497 = vmatpush1.msra.mxu0 %v377
    %498 = vmatprep.subr.mxu0 0.0
    %499 = vmatpush1.msra.mxu0 %v376
    %500 = vmatprep.subr.mxu0 0.0
    %501 = vmatpush1.msra.mxu0 %v375
    %502 = vmatprep.subr.mxu0 0.0
    %503 = vmatpush1.msra.mxu0 %v374
    %504 = vmatprep.subr.mxu0 0.0
    %505 = vmatpush1.msra.mxu0 %v373
    %506 = vmatprep.subr.mxu0 0.0
    %507 = vmatpush2.msra.mxu0 0.0
    %508 = vmatprep.subr.mxu0 0.0
    %509 = vmatpush2.msra.mxu0 0.0
    %510 = vmatprep.subr.mxu0 0.0
    %511 = vmatpush2.msra.mxu0 0.0
    %512 = vmatprep.subr.mxu0 0.0
    %513 = vmatpush2.msra.mxu0 0.0
    %514 = vmatprep.subr.mxu0 0.0
    %515 = vmatpush2.msra.mxu0 0.0
    %516 = vmatprep.subr.mxu0 0.0
    %517 = vmatpush2.msra.mxu0 0.0
    %518 = vmatprep.subr.mxu0 0.0
    %519 = vmatpush2.msra.mxu0 0.0
    %520 = vmatprep.subr.mxu0 0.0
    %521 = vmatpush2.msra.mxu0 0.0
    %522 = vmatprep.subr.mxu0 0.0
    %523 = vmatpush2.msra.mxu0 0.0
    %524 = vmatprep.subr.mxu0 0.0
    %525 = vmatpush2.msra.mxu0 0.0
    %526 = vmatprep.subr.mxu0 0.0
    %527 = vmatpush2.msra.mxu0 0.0
    %528 = vmatprep.subr.mxu0 0.0
    %529 = vmatpush2.msra.mxu0 0.0
    %530 = vmatprep.subr.mxu0 0.0
    %531 = vmatpush2.msra.mxu0 0.0
    %532 = vmatprep.subr.mxu0 0.0
    %533 = vmatpush2.msra.mxu0 0.0
    %534 = vmatprep.subr.mxu0 0.0
    %535 = vmatpush2.msra.mxu0 0.0
    %536 = vmatprep.subr.mxu0 0.0
    %537 = vmatpush2.msra.mxu0 0.0
    %538 = vmatprep.mubr.f32.mxu0 0.0
    %539 = vmatmul.mubr.f32.gmra.mxu0 %v323
    %v540 = vpop.f32.mrf.mxu0
    %v541 = vadd.f32 %v456, %v540
    %v542 = vpop.f32.mrf.mxu0
    %543 = vmatprep.mubr.f32.mxu0 0.0
    %544 = vmatmul.mubr.f32.gmra.mxu0 %v328
    %v545 = vpop.f32.mrf.mxu0
    %v546 = vadd.f32 %v461, %v545
    %v547 = vpop.f32.mrf.mxu0
    %548 = vmatprep.mubr.f32.mxu0 0.0
    %549 = vmatmul.mubr.f32.gmra.mxu0 %v333
    %v550 = vpop.f32.mrf.mxu0
    %v551 = vadd.f32 %v466, %v550
    %v552 = vpop.f32.mrf.mxu0
    %553 = vmatprep.mubr.f32.mxu0 0.0
    %554 = vmatmul.mubr.f32.gmra.mxu0 %v338
    %v555 = vpop.f32.mrf.mxu0
    %v556 = vadd.f32 %v471, %v555
    %v557 = vpop.f32.mrf.mxu0
    %558 = vdwg.mxu0
    %559 = vmatprep.subr.mxu0 0.0
    %560 = vmatpush1.msra.mxu0 %v145
    %561 = vmatprep.subr.mxu0 0.0
    %562 = vmatpush1.msra.mxu0 %v144
    %563 = vmatprep.subr.mxu0 0.0
    %564 = vmatpush1.msra.mxu0 %v143
    %565 = vmatprep.subr.mxu0 0.0
    %566 = vmatpush1.msra.mxu0 %v142
    %567 = vmatprep.subr.mxu0 0.0
    %568 = vmatpush1.msra.mxu0 %v141
    %569 = vmatprep.subr.mxu0 0.0
    %570 = vmatpush1.msra.mxu0 %v140
    %571 = vmatprep.subr.mxu0 0.0
    %572 = vmatpush1.msra.mxu0 %v139
    %573 = vmatprep.subr.mxu0 0.0
    %574 = vmatpush1.msra.mxu0 %v138
    %575 = vmatprep.subr.mxu0 0.0
    %576 = vmatpush1.msra.mxu0 %v137
    %577 = vmatprep.subr.mxu0 0.0
    %578 = vmatpush1.msra.mxu0 %v136
    %579 = vmatprep.subr.mxu0 0.0
    %580 = vmatpush1.msra.mxu0 %v135
    %581 = vmatprep.subr.mxu0 0.0
    %582 = vmatpush1.msra.mxu0 %v134
    %583 = vmatprep.subr.mxu0 0.0
    %584 = vmatpush1.msra.mxu0 %v133
    %585 = vmatprep.subr.mxu0 0.0
    %586 = vmatpush1.msra.mxu0 %v132
    %587 = vmatprep.subr.mxu0 0.0
    %588 = vmatpush1.msra.mxu0 %v131
    %589 = vmatprep.subr.mxu0 0.0
    %590 = vmatpush1.msra.mxu0 %v130
    %591 = vmatprep.subr.mxu0 0.0
    %592 = vmatpush2.msra.mxu0 0.0
    %593 = vmatprep.subr.mxu0 0.0
    %594 = vmatpush2.msra.mxu0 0.0
    %595 = vmatprep.subr.mxu0 0.0
    %596 = vmatpush2.msra.mxu0 0.0
    %597 = vmatprep.subr.mxu0 0.0
    %598 = vmatpush2.msra.mxu0 0.0
    %599 = vmatprep.subr.mxu0 0.0
    %600 = vmatpush2.msra.mxu0 0.0
    %601 = vmatprep.subr.mxu0 0.0
    %602 = vmatpush2.msra.mxu0 0.0
    %603 = vmatprep.subr.mxu0 0.0
    %604 = vmatpush2.msra.mxu0 0.0
    %605 = vmatprep.subr.mxu0 0.0
    %606 = vmatpush2.msra.mxu0 0.0
    %607 = vmatprep.subr.mxu0 0.0
    %608 = vmatpush2.msra.mxu0 0.0
    %609 = vmatprep.subr.mxu0 0.0
    %610 = vmatpush2.msra.mxu0 0.0
    %611 = vmatprep.subr.mxu0 0.0
    %612 = vmatpush2.msra.mxu0 0.0
    %613 = vmatprep.subr.mxu0 0.0
    %614 = vmatpush2.msra.mxu0 0.0
    %615 = vmatprep.subr.mxu0 0.0
    %616 = vmatpush2.msra.mxu0 0.0
    %617 = vmatprep.subr.mxu0 0.0
    %618 = vmatpush2.msra.mxu0 0.0
    %619 = vmatprep.subr.mxu0 0.0
    %620 = vmatpush2.msra.mxu0 0.0
    %621 = vmatprep.subr.mxu0 0.0
    %622 = vmatpush2.msra.mxu0 0.0
    %623 = vmatprep.mubr.f32.mxu0 0.0
    %624 = vmatmul.mubr.f32.gmra.mxu0 %v541
    %v625 = vpop.f32.mrf.mxu0
    %v626 = vadd.f32 0.0, %v625
    %v627 = vpop.f32.mrf.mxu0
    %628 = vmatprep.mubr.f32.mxu0 0.0
    %629 = vmatmul.mubr.f32.gmra.mxu0 %v546
    %v630 = vpop.f32.mrf.mxu0
    %v631 = vadd.f32 0.0, %v630
    %v632 = vpop.f32.mrf.mxu0
    %633 = vmatprep.mubr.f32.mxu0 0.0
    %634 = vmatmul.mubr.f32.gmra.mxu0 %v551
    %v635 = vpop.f32.mrf.mxu0
    %v636 = vadd.f32 0.0, %v635
    %v637 = vpop.f32.mrf.mxu0
    %638 = vmatprep.mubr.f32.mxu0 0.0
    %639 = vmatmul.mubr.f32.gmra.mxu0 %v556
    %v640 = vpop.f32.mrf.mxu0
    %v641 = vadd.f32 0.0, %v640
    %v642 = vpop.f32.mrf.mxu0
    %643 = vdwg.mxu0
    %v644 = vadd.f32 %v626, %v631
    %v645 = vadd.f32 %v644, %v636
    %v646 = vadd.f32 %v645, %v641
    %v647 = vrot.slane %v646, 4
    %v648 = vadd.f32 %v646, %v647
    %v649 = vrot.slane %v648, 2
    %v650 = vadd.f32 %v648, %v649
    %v651 = vrot.slane %v650, 1
    %v652 = vadd.f32 %v650, %v651
    %v653 = vmul.f32 %v541, %v541
    %v654 = vmul.f32 %v546, %v546
    %v655 = vmul.f32 %v551, %v551
    %v656 = vmul.f32 %v556, %v556
    %657 = vmatprep.subr.mxu0 0.0
    %658 = vmatpush1.msra.mxu0 %v145
    %659 = vmatprep.subr.mxu0 0.0
    %660 = vmatpush1.msra.mxu0 %v144
    %661 = vmatprep.subr.mxu0 0.0
    %662 = vmatpush1.msra.mxu0 %v143
    %663 = vmatprep.subr.mxu0 0.0
    %664 = vmatpush1.msra.mxu0 %v142
    %665 = vmatprep.subr.mxu0 0.0
    %666 = vmatpush1.msra.mxu0 %v141
    %667 = vmatprep.subr.mxu0 0.0
    %668 = vmatpush1.msra.mxu0 %v140
    %669 = vmatprep.subr.mxu0 0.0
    %670 = vmatpush1.msra.mxu0 %v139
    %671 = vmatprep.subr.mxu0 0.0
    %672 = vmatpush1.msra.mxu0 %v138
    %673 = vmatprep.subr.mxu0 0.0
    %674 = vmatpush1.msra.mxu0 %v137
    %675 = vmatprep.subr.mxu0 0.0
    %676 = vmatpush1.msra.mxu0 %v136
    %677 = vmatprep.subr.mxu0 0.0
    %678 = vmatpush1.msra.mxu0 %v135
    %679 = vmatprep.subr.mxu0 0.0
    %680 = vmatpush1.msra.mxu0 %v134
    %681 = vmatprep.subr.mxu0 0.0
    %682 = vmatpush1.msra.mxu0 %v133
    %683 = vmatprep.subr.mxu0 0.0
    %684 = vmatpush1.msra.mxu0 %v132
    %685 = vmatprep.subr.mxu0 0.0
    %686 = vmatpush1.msra.mxu0 %v131
    %687 = vmatprep.subr.mxu0 0.0
    %688 = vmatpush1.msra.mxu0 %v130
    %689 = vmatprep.subr.mxu0 0.0
    %690 = vmatpush2.msra.mxu0 0.0
    %691 = vmatprep.subr.mxu0 0.0
    %692 = vmatpush2.msra.mxu0 0.0
    %693 = vmatprep.subr.mxu0 0.0
    %694 = vmatpush2.msra.mxu0 0.0
    %695 = vmatprep.subr.mxu0 0.0
    %696 = vmatpush2.msra.mxu0 0.0
    %697 = vmatprep.subr.mxu0 0.0
    %698 = vmatpush2.msra.mxu0 0.0
    %699 = vmatprep.subr.mxu0 0.0
    %700 = vmatpush2.msra.mxu0 0.0
    %701 = vmatprep.subr.mxu0 0.0
    %702 = vmatpush2.msra.mxu0 0.0
    %703 = vmatprep.subr.mxu0 0.0
    %704 = vmatpush2.msra.mxu0 0.0
    %705 = vmatprep.subr.mxu0 0.0
    %706 = vmatpush2.msra.mxu0 0.0
    %707 = vmatprep.subr.mxu0 0.0
    %708 = vmatpush2.msra.mxu0 0.0
    %709 = vmatprep.subr.mxu0 0.0
    %710 = vmatpush2.msra.mxu0 0.0
    %711 = vmatprep.subr.mxu0 0.0
    %712 = vmatpush2.msra.mxu0 0.0
    %713 = vmatprep.subr.mxu0 0.0
    %714 = vmatpush2.msra.mxu0 0.0
    %715 = vmatprep.subr.mxu0 0.0
    %716 = vmatpush2.msra.mxu0 0.0
    %717 = vmatprep.subr.mxu0 0.0
    %718 = vmatpush2.msra.mxu0 0.0
    %719 = vmatprep.subr.mxu0 0.0
    %720 = vmatpush2.msra.mxu0 0.0
    %721 = vmatprep.mubr.f32.mxu0 0.0
    %722 = vmatmul.mubr.f32.gmra.mxu0 %v653
    %v723 = vpop.f32.mrf.mxu0
    %v724 = vadd.f32 0.0, %v723
    %v725 = vpop.f32.mrf.mxu0
    %726 = vmatprep.mubr.f32.mxu0 0.0
    %727 = vmatmul.mubr.f32.gmra.mxu0 %v654
    %v728 = vpop.f32.mrf.mxu0
    %v729 = vadd.f32 0.0, %v728
    %v730 = vpop.f32.mrf.mxu0
    %731 = vmatprep.mubr.f32.mxu0 0.0
    %732 = vmatmul.mubr.f32.gmra.mxu0 %v655
    %v733 = vpop.f32.mrf.mxu0
    %v734 = vadd.f32 0.0, %v733
    %v735 = vpop.f32.mrf.mxu0
    %736 = vmatprep.mubr.f32.mxu0 0.0
    %737 = vmatmul.mubr.f32.gmra.mxu0 %v656
    %v738 = vpop.f32.mrf.mxu0
    %v739 = vadd.f32 0.0, %v738
    %v740 = vpop.f32.mrf.mxu0
    %741 = vdwg.mxu0
    %v742 = vadd.f32 %v724, %v729
    %v743 = vadd.f32 %v742, %v734
    %v744 = vadd.f32 %v743, %v739
    %v745 = vrot.slane %v744, 4
    %v746 = vadd.f32 %v744, %v745
    %v747 = vrot.slane %v746, 2
    %v748 = vadd.f32 %v746, %v747
    %v749 = vrot.slane %v748, 1
    %v750 = vadd.f32 %v748, %v749
    %v751 = vmul.f32 %v652, 0.001953125
    %v752 = vmul.f32 %v750, 0.001953125
    %v753 = vmul.f32 %v751, %v751
    %v754 = vsub.f32 %v752, %v753
    %v755 = vld [vmem:[%s4] sm:$0x1]
    %v756 = vadd.f32 %v754, 1e-05
    %v757 = vrsqrt.pop %v756
    %v758 = vmul.f32 %v755, %v757
    %v759 = vld [vmem:[%s5] sm:$0x1]
    %v760 = vmul.f32 %v751, %v758
    %v761 = vsub.f32 %v759, %v760
    %v763 = vlaneseq
    %v764 = vshrl.u32 %v763, 7
    %v765 = vsub.s32 0, %v764
    %v766 = vrot.slane %v758, %v765
    %v768 = vmul.f32 %v541, %v766
    %v769 = vmul.f32 %v546, %v766
    %v770 = vmul.f32 %v551, %v766
    %v771 = vmul.f32 %v556, %v766
    %v773 = vlaneseq
    %v774 = vshrl.u32 %v773, 7
    %v775 = vsub.s32 0, %v774
    %v776 = vrot.slane %v761, %v775
    %v778 = vadd.f32 %v768, %v776
    %v779 = vadd.f32 %v769, %v776
    %v780 = vadd.f32 %v770, %v776
    %v781 = vadd.f32 %v771, %v776
    %v782 = vmax.f32 %v778, 0.0
    %v783 = vmax.f32 %v779, 0.0
    %v784 = vmax.f32 %v780, 0.0
    %v785 = vmax.f32 %v781, 0.0
    %786 = vmatprep.subr.mxu0 0.0
    %787 = vmatpush1.msra.mxu0 0.0
    %788 = vmatprep.subr.mxu0 0.0
    %789 = vmatpush1.msra.mxu0 0.0
    %790 = vmatprep.subr.mxu0 0.0
    %791 = vmatpush1.msra.mxu0 0.0
    %792 = vmatprep.subr.mxu0 0.0
    %793 = vmatpush1.msra.mxu0 0.0
    %794 = vmatprep.subr.mxu0 0.0
    %795 = vmatpush1.msra.mxu0 0.0
    %796 = vmatprep.subr.mxu0 0.0
    %797 = vmatpush1.msra.mxu0 0.0
    %798 = vmatprep.subr.mxu0 0.0
    %799 = vmatpush1.msra.mxu0 0.0
    %800 = vmatprep.subr.mxu0 0.0
    %801 = vmatpush1.msra.mxu0 0.0
    %802 = vmatprep.subr.mxu0 0.0
    %803 = vmatpush1.msra.mxu0 0.0
    %804 = vmatprep.subr.mxu0 0.0
    %805 = vmatpush1.msra.mxu0 0.0
    %806 = vmatprep.subr.mxu0 0.0
    %807 = vmatpush1.msra.mxu0 0.0
    %808 = vmatprep.subr.mxu0 0.0
    %809 = vmatpush1.msra.mxu0 0.0
    %810 = vmatprep.subr.mxu0 0.0
    %811 = vmatpush1.msra.mxu0 %v785
    %812 = vmatprep.subr.mxu0 0.0
    %813 = vmatpush1.msra.mxu0 %v784
    %814 = vmatprep.subr.mxu0 0.0
    %815 = vmatpush1.msra.mxu0 %v783
    %816 = vmatprep.subr.mxu0 0.0
    %817 = vmatpush1.msra.mxu0 %v782
    %818 = vmatprep.subr.mxu0 0.0
    %819 = vmatpush2.msra.mxu0 0.0
    %820 = vmatprep.subr.mxu0 0.0
    %821 = vmatpush2.msra.mxu0 0.0
    %822 = vmatprep.subr.mxu0 0.0
    %823 = vmatpush2.msra.mxu0 0.0
    %824 = vmatprep.subr.mxu0 0.0
    %825 = vmatpush2.msra.mxu0 0.0
    %826 = vmatprep.subr.mxu0 0.0
    %827 = vmatpush2.msra.mxu0 0.0
    %828 = vmatprep.subr.mxu0 0.0
    %829 = vmatpush2.msra.mxu0 0.0
    %830 = vmatprep.subr.mxu0 0.0
    %831 = vmatpush2.msra.mxu0 0.0
    %832 = vmatprep.subr.mxu0 0.0
    %833 = vmatpush2.msra.mxu0 0.0
    %834 = vmatprep.subr.mxu0 0.0
    %835 = vmatpush2.msra.mxu0 0.0
    %836 = vmatprep.subr.mxu0 0.0
    %837 = vmatpush2.msra.mxu0 0.0
    %838 = vmatprep.subr.mxu0 0.0
    %839 = vmatpush2.msra.mxu0 0.0
    %840 = vmatprep.subr.mxu0 0.0
    %841 = vmatpush2.msra.mxu0 0.0
    %842 = vmatprep.subr.mxu0 0.0
    %843 = vmatpush2.msra.mxu0 0.0
    %844 = vmatprep.subr.mxu0 0.0
    %845 = vmatpush2.msra.mxu0 0.0
    %846 = vmatprep.subr.mxu0 0.0
    %847 = vmatpush2.msra.mxu0 0.0
    %848 = vmatprep.subr.mxu0 0.0
    %849 = vmatpush2.msra.mxu0 0.0
    %850 = vmatprep.mubr.f32.mxu0 0.0
    %851 = vmatmul.mubr.f32.gmra.mxu0 %v148
    %v852 = vpop.f32.mrf.mxu0
    %v853 = vadd.f32 0.0, %v852
    %v854 = vpop.f32.mrf.mxu0
    %855 = vmatprep.mubr.f32.mxu0 0.0
    %856 = vmatmul.mubr.f32.gmra.mxu0 %v151
    %v857 = vpop.f32.mrf.mxu0
    %v858 = vadd.f32 0.0, %v857
    %v859 = vpop.f32.mrf.mxu0
    %860 = vmatprep.mubr.f32.mxu0 0.0
    %861 = vmatmul.mubr.f32.gmra.mxu0 %v154
    %v862 = vpop.f32.mrf.mxu0
    %v863 = vadd.f32 0.0, %v862
    %v864 = vpop.f32.mrf.mxu0
    %865 = vmatprep.mubr.f32.mxu0 0.0
    %866 = vmatmul.mubr.f32.gmra.mxu0 %v157
    %v867 = vpop.f32.mrf.mxu0
    %v868 = vadd.f32 0.0, %v867
    %v869 = vpop.f32.mrf.mxu0
    %870 = vdwg.mxu0
    %871 = vmatprep.subr.mxu0 0.0
    %872 = vmatpush1.msra.mxu0 0.0
    %873 = vmatprep.subr.mxu0 0.0
    %874 = vmatpush1.msra.mxu0 0.0
    %875 = vmatprep.subr.mxu0 0.0
    %876 = vmatpush1.msra.mxu0 0.0
    %877 = vmatprep.subr.mxu0 0.0
    %878 = vmatpush1.msra.mxu0 0.0
    %879 = vmatprep.subr.mxu0 0.0
    %880 = vmatpush1.msra.mxu0 0.0
    %881 = vmatprep.subr.mxu0 0.0
    %882 = vmatpush1.msra.mxu0 0.0
    %883 = vmatprep.subr.mxu0 0.0
    %884 = vmatpush1.msra.mxu0 0.0
    %885 = vmatprep.subr.mxu0 0.0
    %886 = vmatpush1.msra.mxu0 0.0
    %887 = vmatprep.subr.mxu0 0.0
    %888 = vmatpush1.msra.mxu0 0.0
    %889 = vmatprep.subr.mxu0 0.0
    %890 = vmatpush1.msra.mxu0 0.0
    %891 = vmatprep.subr.mxu0 0.0
    %892 = vmatpush1.msra.mxu0 0.0
    %893 = vmatprep.subr.mxu0 0.0
    %894 = vmatpush1.msra.mxu0 0.0
    %895 = vmatprep.subr.mxu0 0.0
    %896 = vmatpush1.msra.mxu0 %v785
    %897 = vmatprep.subr.mxu0 0.0
    %898 = vmatpush1.msra.mxu0 %v784
    %899 = vmatprep.subr.mxu0 0.0
    %900 = vmatpush1.msra.mxu0 %v783
    %901 = vmatprep.subr.mxu0 0.0
    %902 = vmatpush1.msra.mxu0 %v782
    %903 = vmatprep.subr.mxu0 0.0
    %904 = vmatpush2.msra.mxu0 0.0
    %905 = vmatprep.subr.mxu0 0.0
    %906 = vmatpush2.msra.mxu0 0.0
    %907 = vmatprep.subr.mxu0 0.0
    %908 = vmatpush2.msra.mxu0 0.0
    %909 = vmatprep.subr.mxu0 0.0
    %910 = vmatpush2.msra.mxu0 0.0
    %911 = vmatprep.subr.mxu0 0.0
    %912 = vmatpush2.msra.mxu0 0.0
    %913 = vmatprep.subr.mxu0 0.0
    %914 = vmatpush2.msra.mxu0 0.0
    %915 = vmatprep.subr.mxu0 0.0
    %916 = vmatpush2.msra.mxu0 0.0
    %917 = vmatprep.subr.mxu0 0.0
    %918 = vmatpush2.msra.mxu0 0.0
    %919 = vmatprep.subr.mxu0 0.0
    %920 = vmatpush2.msra.mxu0 0.0
    %921 = vmatprep.subr.mxu0 0.0
    %922 = vmatpush2.msra.mxu0 0.0
    %923 = vmatprep.subr.mxu0 0.0
    %924 = vmatpush2.msra.mxu0 0.0
    %925 = vmatprep.subr.mxu0 0.0
    %926 = vmatpush2.msra.mxu0 0.0
    %927 = vmatprep.subr.mxu0 0.0
    %928 = vmatpush2.msra.mxu0 0.0
    %929 = vmatprep.subr.mxu0 0.0
    %930 = vmatpush2.msra.mxu0 0.0
    %931 = vmatprep.subr.mxu0 0.0
    %932 = vmatpush2.msra.mxu0 0.0
    %933 = vmatprep.subr.mxu0 0.0
    %934 = vmatpush2.msra.mxu0 0.0
    %935 = vmatprep.mubr.f32.mxu0 0.0
    %936 = vmatmul.mubr.f32.gmra.mxu0 %v245
    %v937 = vpop.f32.mrf.mxu0
    %v938 = vadd.f32 0.0, %v937
    %v939 = vpop.f32.mrf.mxu0
    %940 = vmatprep.mubr.f32.mxu0 0.0
    %941 = vmatmul.mubr.f32.gmra.mxu0 %v248
    %v942 = vpop.f32.mrf.mxu0
    %v943 = vadd.f32 0.0, %v942
    %v944 = vpop.f32.mrf.mxu0
    %945 = vmatprep.mubr.f32.mxu0 0.0
    %946 = vmatmul.mubr.f32.gmra.mxu0 %v251
    %v947 = vpop.f32.mrf.mxu0
    %v948 = vadd.f32 0.0, %v947
    %v949 = vpop.f32.mrf.mxu0
    %950 = vmatprep.mubr.f32.mxu0 0.0
    %951 = vmatmul.mubr.f32.gmra.mxu0 %v254
    %v952 = vpop.f32.mrf.mxu0
    %v953 = vadd.f32 0.0, %v952
    %v954 = vpop.f32.mrf.mxu0
    %955 = vdwg.mxu0
    %v956 = vld [vmem:[#allocation10] sm:$0xff]
    %v957 = vld [vmem:[#allocation10 + $0x8] sm:$0xff]
    %v958 = vld [vmem:[#allocation10 + $0x10] sm:$0xff]
    %v959 = vld [vmem:[#allocation10 + $0x18] sm:$0xff]
    %v960 = vld [vmem:[#allocation10 + $0x20] sm:$0xff]
    %v961 = vld [vmem:[#allocation10 + $0x28] sm:$0xff]
    %v962 = vld [vmem:[#allocation10 + $0x30] sm:$0xff]
    %v963 = vld [vmem:[#allocation10 + $0x38] sm:$0xff]
    %v964 = vld [vmem:[#allocation10 + $0x40] sm:$0xff]
    %v965 = vld [vmem:[#allocation10 + $0x48] sm:$0xff]
    %v966 = vld [vmem:[#allocation10 + $0x50] sm:$0xff]
    %v967 = vld [vmem:[#allocation10 + $0x58] sm:$0xff]
    %v968 = vld [vmem:[#allocation10 + $0x60] sm:$0xff]
    %v969 = vld [vmem:[#allocation10 + $0x68] sm:$0xff]
    %v970 = vld [vmem:[#allocation10 + $0x70] sm:$0xff]
    %v971 = vld [vmem:[#allocation10 + $0x78] sm:$0xff]
    %v972 = vld [vmem:[#allocation10 + $0x80] sm:$0xff]
    %v973 = vld [vmem:[#allocation10 + $0x88] sm:$0xff]
    %v974 = vld [vmem:[#allocation10 + $0x90] sm:$0xff]
    %v975 = vld [vmem:[#allocation10 + $0x98] sm:$0xff]
    %v976 = vld [vmem:[#allocation10 + $0xa0] sm:$0xff]
    %v977 = vld [vmem:[#allocation10 + $0xa8] sm:$0xff]
    %v978 = vld [vmem:[#allocation10 + $0xb0] sm:$0xff]
    %v979 = vld [vmem:[#allocation10 + $0xb8] sm:$0xff]
    %v980 = vld [vmem:[#allocation10 + $0xc0] sm:$0xff]
    %v981 = vld [vmem:[#allocation10 + $0xc8] sm:$0xff]
    %v982 = vld [vmem:[#allocation10 + $0xd0] sm:$0xff]
    %v983 = vld [vmem:[#allocation10 + $0xd8] sm:$0xff]
    %v984 = vld [vmem:[#allocation10 + $0xe0] sm:$0xff]
    %v985 = vld [vmem:[#allocation10 + $0xe8] sm:$0xff]
    %v986 = vld [vmem:[#allocation10 + $0xf0] sm:$0xff]
    %v987 = vld [vmem:[#allocation10 + $0xf8] sm:$0xff]
    %v988 = vld [vmem:[#allocation10 + $0x100] sm:$0xff]
    %v989 = vld [vmem:[#allocation10 + $0x108] sm:$0xff]
    %v990 = vld [vmem:[#allocation10 + $0x110] sm:$0xff]
    %v991 = vld [vmem:[#allocation10 + $0x118] sm:$0xff]
    %v992 = vld [vmem:[#allocation10 + $0x120] sm:$0xff]
    %v993 = vld [vmem:[#allocation10 + $0x128] sm:$0xff]
    %v994 = vld [vmem:[#allocation10 + $0x130] sm:$0xff]
    %v995 = vld [vmem:[#allocation10 + $0x138] sm:$0xff]
    %v996 = vld [vmem:[#allocation10 + $0x140] sm:$0xff]
    %v997 = vld [vmem:[#allocation10 + $0x148] sm:$0xff]
    %v998 = vld [vmem:[#allocation10 + $0x150] sm:$0xff]
    %v999 = vld [vmem:[#allocation10 + $0x158] sm:$0xff]
    %v1000 = vld [vmem:[#allocation10 + $0x160] sm:$0xff]
    %v1001 = vld [vmem:[#allocation10 + $0x168] sm:$0xff]
    %v1002 = vld [vmem:[#allocation10 + $0x170] sm:$0xff]
    %v1003 = vld [vmem:[#allocation10 + $0x178] sm:$0xff]
    %1004 = vmatprep.subr.mxu0 0.0
    %1005 = vmatpush1.msra.mxu0 %v971
    %1006 = vmatprep.subr.mxu0 0.0
    %1007 = vmatpush1.msra.mxu0 %v970
    %1008 = vmatprep.subr.mxu0 0.0
    %1009 = vmatpush1.msra.mxu0 %v969
    %1010 = vmatprep.subr.mxu0 0.0
    %1011 = vmatpush1.msra.mxu0 %v968
    %1012 = vmatprep.subr.mxu0 0.0
    %1013 = vmatpush1.msra.mxu0 %v967
    %1014 = vmatprep.subr.mxu0 0.0
    %1015 = vmatpush1.msra.mxu0 %v966
    %1016 = vmatprep.subr.mxu0 0.0
    %1017 = vmatpush1.msra.mxu0 %v965
    %1018 = vmatprep.subr.mxu0 0.0
    %1019 = vmatpush1.msra.mxu0 %v964
    %1020 = vmatprep.subr.mxu0 0.0
    %1021 = vmatpush1.msra.mxu0 %v963
    %1022 = vmatprep.subr.mxu0 0.0
    %1023 = vmatpush1.msra.mxu0 %v962
    %1024 = vmatprep.subr.mxu0 0.0
    %1025 = vmatpush1.msra.mxu0 %v961
    %1026 = vmatprep.subr.mxu0 0.0
    %1027 = vmatpush1.msra.mxu0 %v960
    %1028 = vmatprep.subr.mxu0 0.0
    %1029 = vmatpush1.msra.mxu0 %v959
    %1030 = vmatprep.subr.mxu0 0.0
    %1031 = vmatpush1.msra.mxu0 %v958
    %1032 = vmatprep.subr.mxu0 0.0
    %1033 = vmatpush1.msra.mxu0 %v957
    %1034 = vmatprep.subr.mxu0 0.0
    %1035 = vmatpush1.msra.mxu0 %v956
    %1036 = vmatprep.subr.mxu0 0.0
    %1037 = vmatpush2.msra.mxu0 %v987
    %1038 = vmatprep.subr.mxu0 0.0
    %1039 = vmatpush2.msra.mxu0 %v986
    %1040 = vmatprep.subr.mxu0 0.0
    %1041 = vmatpush2.msra.mxu0 %v985
    %1042 = vmatprep.subr.mxu0 0.0
    %1043 = vmatpush2.msra.mxu0 %v984
    %1044 = vmatprep.subr.mxu0 0.0
    %1045 = vmatpush2.msra.mxu0 %v983
    %1046 = vmatprep.subr.mxu0 0.0
    %1047 = vmatpush2.msra.mxu0 %v982
    %1048 = vmatprep.subr.mxu0 0.0
    %1049 = vmatpush2.msra.mxu0 %v981
    %1050 = vmatprep.subr.mxu0 0.0
    %1051 = vmatpush2.msra.mxu0 %v980
    %1052 = vmatprep.subr.mxu0 0.0
    %1053 = vmatpush2.msra.mxu0 %v979
    %1054 = vmatprep.subr.mxu0 0.0
    %1055 = vmatpush2.msra.mxu0 %v978
    %1056 = vmatprep.subr.mxu0 0.0
    %1057 = vmatpush2.msra.mxu0 %v977
    %1058 = vmatprep.subr.mxu0 0.0
    %1059 = vmatpush2.msra.mxu0 %v976
    %1060 = vmatprep.subr.mxu0 0.0
    %1061 = vmatpush2.msra.mxu0 %v975
    %1062 = vmatprep.subr.mxu0 0.0
    %1063 = vmatpush2.msra.mxu0 %v974
    %1064 = vmatprep.subr.mxu0 0.0
    %1065 = vmatpush2.msra.mxu0 %v973
    %1066 = vmatprep.subr.mxu0 0.0
    %1067 = vmatpush2.msra.mxu0 %v972
    %1068 = vmatprep.mubr.f32.mxu0 %v782
    %1069 = vmatmul.mubr.f32.gmra.mxu0 %v853
    %v1070 = vpop.f32.mrf.mxu0
    %v1071 = vadd.f32 0.0, %v1070
    %v1072 = vpop.f32.mrf.mxu0
    %1073 = vmatprep.mubr.f32.mxu0 %v783
    %1074 = vmatmul.mubr.f32.gmra.mxu0 %v858
    %v1075 = vpop.f32.mrf.mxu0
    %v1076 = vadd.f32 0.0, %v1075
    %v1077 = vpop.f32.mrf.mxu0
    %1078 = vmatprep.mubr.f32.mxu0 %v784
    %1079 = vmatmul.mubr.f32.gmra.mxu0 %v863
    %v1080 = vpop.f32.mrf.mxu0
    %v1081 = vadd.f32 0.0, %v1080
    %v1082 = vpop.f32.mrf.mxu0
    %1083 = vmatprep.mubr.f32.mxu0 %v785
    %1084 = vmatmul.mubr.f32.gmra.mxu0 %v868
    %v1085 = vpop.f32.mrf.mxu0
    %v1086 = vadd.f32 0.0, %v1085
    %v1087 = vpop.f32.mrf.mxu0
    %1088 = vdwg.mxu0
    %1089 = vmatprep.subr.mxu0 0.0
    %1090 = vmatpush1.msra.mxu0 %v1003
    %1091 = vmatprep.subr.mxu0 0.0
    %1092 = vmatpush1.msra.mxu0 %v1002
    %1093 = vmatprep.subr.mxu0 0.0
    %1094 = vmatpush1.msra.mxu0 %v1001
    %1095 = vmatprep.subr.mxu0 0.0
    %1096 = vmatpush1.msra.mxu0 %v1000
    %1097 = vmatprep.subr.mxu0 0.0
    %1098 = vmatpush1.msra.mxu0 %v999
    %1099 = vmatprep.subr.mxu0 0.0
    %1100 = vmatpush1.msra.mxu0 %v998
    %1101 = vmatprep.subr.mxu0 0.0
    %1102 = vmatpush1.msra.mxu0 %v997
    %1103 = vmatprep.subr.mxu0 0.0
    %1104 = vmatpush1.msra.mxu0 %v996
    %1105 = vmatprep.subr.mxu0 0.0
    %1106 = vmatpush1.msra.mxu0 %v995
    %1107 = vmatprep.subr.mxu0 0.0
    %1108 = vmatpush1.msra.mxu0 %v994
    %1109 = vmatprep.subr.mxu0 0.0
    %1110 = vmatpush1.msra.mxu0 %v993
    %1111 = vmatprep.subr.mxu0 0.0
    %1112 = vmatpush1.msra.mxu0 %v992
    %1113 = vmatprep.subr.mxu0 0.0
    %1114 = vmatpush1.msra.mxu0 %v991
    %1115 = vmatprep.subr.mxu0 0.0
    %1116 = vmatpush1.msra.mxu0 %v990
    %1117 = vmatprep.subr.mxu0 0.0
    %1118 = vmatpush1.msra.mxu0 %v989
    %1119 = vmatprep.subr.mxu0 0.0
    %1120 = vmatpush1.msra.mxu0 %v988
    %1121 = vmatprep.subr.mxu0 0.0
    %1122 = vmatpush2.msra.mxu0 0.0
    %1123 = vmatprep.subr.mxu0 0.0
    %1124 = vmatpush2.msra.mxu0 0.0
    %1125 = vmatprep.subr.mxu0 0.0
    %1126 = vmatpush2.msra.mxu0 0.0
    %1127 = vmatprep.subr.mxu0 0.0
    %1128 = vmatpush2.msra.mxu0 0.0
    %1129 = vmatprep.subr.mxu0 0.0
    %1130 = vmatpush2.msra.mxu0 0.0
    %1131 = vmatprep.subr.mxu0 0.0
    %1132 = vmatpush2.msra.mxu0 0.0
    %1133 = vmatprep.subr.mxu0 0.0
    %1134 = vmatpush2.msra.mxu0 0.0
    %1135 = vmatprep.subr.mxu0 0.0
    %1136 = vmatpush2.msra.mxu0 0.0
    %1137 = vmatprep.subr.mxu0 0.0
    %1138 = vmatpush2.msra.mxu0 0.0
    %1139 = vmatprep.subr.mxu0 0.0
    %1140 = vmatpush2.msra.mxu0 0.0
    %1141 = vmatprep.subr.mxu0 0.0
    %1142 = vmatpush2.msra.mxu0 0.0
    %1143 = vmatprep.subr.mxu0 0.0
    %1144 = vmatpush2.msra.mxu0 0.0
    %1145 = vmatprep.subr.mxu0 0.0
    %1146 = vmatpush2.msra.mxu0 0.0
    %1147 = vmatprep.subr.mxu0 0.0
    %1148 = vmatpush2.msra.mxu0 0.0
    %1149 = vmatprep.subr.mxu0 0.0
    %1150 = vmatpush2.msra.mxu0 0.0
    %1151 = vmatprep.subr.mxu0 0.0
    %1152 = vmatpush2.msra.mxu0 0.0
    %1153 = vmatprep.mubr.f32.mxu0 0.0
    %1154 = vmatmul.mubr.f32.gmra.mxu0 %v938
    %v1155 = vpop.f32.mrf.mxu0
    %v1156 = vadd.f32 %v1071, %v1155
    %v1157 = vpop.f32.mrf.mxu0
    %1158 = vmatprep.mubr.f32.mxu0 0.0
    %1159 = vmatmul.mubr.f32.gmra.mxu0 %v943
    %v1160 = vpop.f32.mrf.mxu0
    %v1161 = vadd.f32 %v1076, %v1160
    %v1162 = vpop.f32.mrf.mxu0
    %1163 = vmatprep.mubr.f32.mxu0 0.0
    %1164 = vmatmul.mubr.f32.gmra.mxu0 %v948
    %v1165 = vpop.f32.mrf.mxu0
    %v1166 = vadd.f32 %v1081, %v1165
    %v1167 = vpop.f32.mrf.mxu0
    %1168 = vmatprep.mubr.f32.mxu0 0.0
    %1169 = vmatmul.mubr.f32.gmra.mxu0 %v953
    %v1170 = vpop.f32.mrf.mxu0
    %v1171 = vadd.f32 %v1086, %v1170
    %v1172 = vpop.f32.mrf.mxu0
    %1173 = vdwg.mxu0
    %1174 = vmatprep.subr.mxu0 0.0
    %1175 = vmatpush1.msra.mxu0 %v145
    %1176 = vmatprep.subr.mxu0 0.0
    %1177 = vmatpush1.msra.mxu0 %v144
    %1178 = vmatprep.subr.mxu0 0.0
    %1179 = vmatpush1.msra.mxu0 %v143
    %1180 = vmatprep.subr.mxu0 0.0
    %1181 = vmatpush1.msra.mxu0 %v142
    %1182 = vmatprep.subr.mxu0 0.0
    %1183 = vmatpush1.msra.mxu0 %v141
    %1184 = vmatprep.subr.mxu0 0.0
    %1185 = vmatpush1.msra.mxu0 %v140
    %1186 = vmatprep.subr.mxu0 0.0
    %1187 = vmatpush1.msra.mxu0 %v139
    %1188 = vmatprep.subr.mxu0 0.0
    %1189 = vmatpush1.msra.mxu0 %v138
    %1190 = vmatprep.subr.mxu0 0.0
    %1191 = vmatpush1.msra.mxu0 %v137
    %1192 = vmatprep.subr.mxu0 0.0
    %1193 = vmatpush1.msra.mxu0 %v136
    %1194 = vmatprep.subr.mxu0 0.0
    %1195 = vmatpush1.msra.mxu0 %v135
    %1196 = vmatprep.subr.mxu0 0.0
    %1197 = vmatpush1.msra.mxu0 %v134
    %1198 = vmatprep.subr.mxu0 0.0
    %1199 = vmatpush1.msra.mxu0 %v133
    %1200 = vmatprep.subr.mxu0 0.0
    %1201 = vmatpush1.msra.mxu0 %v132
    %1202 = vmatprep.subr.mxu0 0.0
    %1203 = vmatpush1.msra.mxu0 %v131
    %1204 = vmatprep.subr.mxu0 0.0
    %1205 = vmatpush1.msra.mxu0 %v130
    %1206 = vmatprep.subr.mxu0 0.0
    %1207 = vmatpush2.msra.mxu0 0.0
    %1208 = vmatprep.subr.mxu0 0.0
    %1209 = vmatpush2.msra.mxu0 0.0
    %1210 = vmatprep.subr.mxu0 0.0
    %1211 = vmatpush2.msra.mxu0 0.0
    %1212 = vmatprep.subr.mxu0 0.0
    %1213 = vmatpush2.msra.mxu0 0.0
    %1214 = vmatprep.subr.mxu0 0.0
    %1215 = vmatpush2.msra.mxu0 0.0
    %1216 = vmatprep.subr.mxu0 0.0
    %1217 = vmatpush2.msra.mxu0 0.0
    %1218 = vmatprep.subr.mxu0 0.0
    %1219 = vmatpush2.msra.mxu0 0.0
    %1220 = vmatprep.subr.mxu0 0.0
    %1221 = vmatpush2.msra.mxu0 0.0
    %1222 = vmatprep.subr.mxu0 0.0
    %1223 = vmatpush2.msra.mxu0 0.0
    %1224 = vmatprep.subr.mxu0 0.0
    %1225 = vmatpush2.msra.mxu0 0.0
    %1226 = vmatprep.subr.mxu0 0.0
    %1227 = vmatpush2.msra.mxu0 0.0
    %1228 = vmatprep.subr.mxu0 0.0
    %1229 = vmatpush2.msra.mxu0 0.0
    %1230 = vmatprep.subr.mxu0 0.0
    %1231 = vmatpush2.msra.mxu0 0.0
    %1232 = vmatprep.subr.mxu0 0.0
    %1233 = vmatpush2.msra.mxu0 0.0
    %1234 = vmatprep.subr.mxu0 0.0
    %1235 = vmatpush2.msra.mxu0 0.0
    %1236 = vmatprep.subr.mxu0 0.0
    %1237 = vmatpush2.msra.mxu0 0.0
    %1238 = vmatprep.mubr.f32.mxu0 0.0
    %1239 = vmatmul.mubr.f32.gmra.mxu0 %v1156
    %v1240 = vpop.f32.mrf.mxu0
    %v1241 = vadd.f32 0.0, %v1240
    %v1242 = vpop.f32.mrf.mxu0
    %1243 = vmatprep.mubr.f32.mxu0 0.0
    %1244 = vmatmul.mubr.f32.gmra.mxu0 %v1161
    %v1245 = vpop.f32.mrf.mxu0
    %v1246 = vadd.f32 0.0, %v1245
    %v1247 = vpop.f32.mrf.mxu0
    %1248 = vmatprep.mubr.f32.mxu0 0.0
    %1249 = vmatmul.mubr.f32.gmra.mxu0 %v1166
    %v1250 = vpop.f32.mrf.mxu0
    %v1251 = vadd.f32 0.0, %v1250
    %v1252 = vpop.f32.mrf.mxu0
    %1253 = vmatprep.mubr.f32.mxu0 0.0
    %1254 = vmatmul.mubr.f32.gmra.mxu0 %v1171
    %v1255 = vpop.f32.mrf.mxu0
    %v1256 = vadd.f32 0.0, %v1255
    %v1257 = vpop.f32.mrf.mxu0
    %1258 = vdwg.mxu0
    %v1259 = vadd.f32 %v1241, %v1246
    %v1260 = vadd.f32 %v1259, %v1251
    %v1261 = vadd.f32 %v1260, %v1256
    %v1262 = vrot.slane %v1261, 4
    %v1263 = vadd.f32 %v1261, %v1262
    %v1264 = vrot.slane %v1263, 2
    %v1265 = vadd.f32 %v1263, %v1264
    %v1266 = vrot.slane %v1265, 1
    %v1267 = vadd.f32 %v1265, %v1266
    %v1268 = vmul.f32 %v1156, %v1156
    %v1269 = vmul.f32 %v1161, %v1161
    %v1270 = vmul.f32 %v1166, %v1166
    %v1271 = vmul.f32 %v1171, %v1171
    %1272 = vmatprep.subr.mxu0 0.0
    %1273 = vmatpush1.msra.mxu0 %v145
    %1274 = vmatprep.subr.mxu0 0.0
    %1275 = vmatpush1.msra.mxu0 %v144
    %1276 = vmatprep.subr.mxu0 0.0
    %1277 = vmatpush1.msra.mxu0 %v143
    %1278 = vmatprep.subr.mxu0 0.0
    %1279 = vmatpush1.msra.mxu0 %v142
    %1280 = vmatprep.subr.mxu0 0.0
    %1281 = vmatpush1.msra.mxu0 %v141
    %1282 = vmatprep.subr.mxu0 0.0
    %1283 = vmatpush1.msra.mxu0 %v140
    %1284 = vmatprep.subr.mxu0 0.0
    %1285 = vmatpush1.msra.mxu0 %v139
    %1286 = vmatprep.subr.mxu0 0.0
    %1287 = vmatpush1.msra.mxu0 %v138
    %1288 = vmatprep.subr.mxu0 0.0
    %1289 = vmatpush1.msra.mxu0 %v137
    %1290 = vmatprep.subr.mxu0 0.0
    %1291 = vmatpush1.msra.mxu0 %v136
    %1292 = vmatprep.subr.mxu0 0.0
    %1293 = vmatpush1.msra.mxu0 %v135
    %1294 = vmatprep.subr.mxu0 0.0
    %1295 = vmatpush1.msra.mxu0 %v134
    %1296 = vmatprep.subr.mxu0 0.0
    %1297 = vmatpush1.msra.mxu0 %v133
    %1298 = vmatprep.subr.mxu0 0.0
    %1299 = vmatpush1.msra.mxu0 %v132
    %1300 = vmatprep.subr.mxu0 0.0
    %1301 = vmatpush1.msra.mxu0 %v131
    %1302 = vmatprep.subr.mxu0 0.0
    %1303 = vmatpush1.msra.mxu0 %v130
    %1304 = vmatprep.subr.mxu0 0.0
    %1305 = vmatpush2.msra.mxu0 0.0
    %1306 = vmatprep.subr.mxu0 0.0
    %1307 = vmatpush2.msra.mxu0 0.0
    %1308 = vmatprep.subr.mxu0 0.0
    %1309 = vmatpush2.msra.mxu0 0.0
    %1310 = vmatprep.subr.mxu0 0.0
    %1311 = vmatpush2.msra.mxu0 0.0
    %1312 = vmatprep.subr.mxu0 0.0
    %1313 = vmatpush2.msra.mxu0 0.0
    %1314 = vmatprep.subr.mxu0 0.0
    %1315 = vmatpush2.msra.mxu0 0.0
    %1316 = vmatprep.subr.mxu0 0.0
    %1317 = vmatpush2.msra.mxu0 0.0
    %1318 = vmatprep.subr.mxu0 0.0
    %1319 = vmatpush2.msra.mxu0 0.0
    %1320 = vmatprep.subr.mxu0 0.0
    %1321 = vmatpush2.msra.mxu0 0.0
    %1322 = vmatprep.subr.mxu0 0.0
    %1323 = vmatpush2.msra.mxu0 0.0
    %1324 = vmatprep.subr.mxu0 0.0
    %1325 = vmatpush2.msra.mxu0 0.0
    %1326 = vmatprep.subr.mxu0 0.0
    %1327 = vmatpush2.msra.mxu0 0.0
    %1328 = vmatprep.subr.mxu0 0.0
    %1329 = vmatpush2.msra.mxu0 0.0
    %1330 = vmatprep.subr.mxu0 0.0
    %1331 = vmatpush2.msra.mxu0 0.0
    %1332 = vmatprep.subr.mxu0 0.0
    %1333 = vmatpush2.msra.mxu0 0.0
    %1334 = vmatprep.subr.mxu0 0.0
    %1335 = vmatpush2.msra.mxu0 0.0
    %1336 = vmatprep.mubr.f32.mxu0 0.0
    %1337 = vmatmul.mubr.f32.gmra.mxu0 %v1268
    %v1338 = vpop.f32.mrf.mxu0
    %v1339 = vadd.f32 0.0, %v1338
    %v1340 = vpop.f32.mrf.mxu0
    %1341 = vmatprep.mubr.f32.mxu0 0.0
    %1342 = vmatmul.mubr.f32.gmra.mxu0 %v1269
    %v1343 = vpop.f32.mrf.mxu0
    %v1344 = vadd.f32 0.0, %v1343
    %v1345 = vpop.f32.mrf.mxu0
    %1346 = vmatprep.mubr.f32.mxu0 0.0
    %1347 = vmatmul.mubr.f32.gmra.mxu0 %v1270
    %v1348 = vpop.f32.mrf.mxu0
    %v1349 = vadd.f32 0.0, %v1348
    %v1350 = vpop.f32.mrf.mxu0
    %1351 = vmatprep.mubr.f32.mxu0 0.0
    %1352 = vmatmul.mubr.f32.gmra.mxu0 %v1271
    %v1353 = vpop.f32.mrf.mxu0
    %v1354 = vadd.f32 0.0, %v1353
    %v1355 = vpop.f32.mrf.mxu0
    %1356 = vdwg.mxu0
    %v1357 = vadd.f32 %v1339, %v1344
    %v1358 = vadd.f32 %v1357, %v1349
    %v1359 = vadd.f32 %v1358, %v1354
    %v1360 = vrot.slane %v1359, 4
    %v1361 = vadd.f32 %v1359, %v1360
    %v1362 = vrot.slane %v1361, 2
    %v1363 = vadd.f32 %v1361, %v1362
    %v1364 = vrot.slane %v1363, 1
    %v1365 = vadd.f32 %v1363, %v1364
    %v1366 = vmul.f32 %v1267, 0.001953125
    %v1367 = vmul.f32 %v1365, 0.001953125
    %v1368 = vmul.f32 %v1366, %v1366
    %v1369 = vsub.f32 %v1367, %v1368
    %v1370 = vld [vmem:[%s7] sm:$0x1]
    %v1371 = vadd.f32 %v1369, 1e-05
    %v1372 = vrsqrt.pop %v1371
    %v1373 = vmul.f32 %v1370, %v1372
    %v1374 = vld [vmem:[%s8] sm:$0x1]
    %v1375 = vmul.f32 %v1366, %v1373
    %v1376 = vsub.f32 %v1374, %v1375
    %v1378 = vlaneseq
    %v1379 = vshrl.u32 %v1378, 7
    %v1380 = vsub.s32 0, %v1379
    %v1381 = vrot.slane %v1373, %v1380
    %v1383 = vmul.f32 %v1156, %v1381
    %v1384 = vmul.f32 %v1161, %v1381
    %v1385 = vmul.f32 %v1166, %v1381
    %v1386 = vmul.f32 %v1171, %v1381
    %v1388 = vlaneseq
    %v1389 = vshrl.u32 %v1388, 7
    %v1390 = vsub.s32 0, %v1389
    %v1391 = vrot.slane %v1376, %v1390
    %v1393 = vadd.f32 %v1383, %v1391
    %v1394 = vadd.f32 %v1384, %v1391
    %v1395 = vadd.f32 %v1385, %v1391
    %v1396 = vadd.f32 %v1386, %v1391
    %v1397 = vadd.f32 %v118, %v1393
    %v1398 = vadd.f32 %v119, %v1394
    %v1399 = vadd.f32 %v120, %v1395
    %v1400 = vadd.f32 %v121, %v1396
    %1401 = vst [vmem:[#allocation13] sm:$0xff] %v1397
    %1402 = vst [vmem:[#allocation13 + $0x8] sm:$0xff] %v1398
    %1403 = vst [vmem:[#allocation13 + $0x10] sm:$0xff] %v1399
    %1404 = vst [vmem:[#allocation13 + $0x18] sm:$0xff] %v1400
    // Predicated region
    $region66: #{tpu_custom_call.1} parent=1 // pred_check
      _
    $region67: #{tpu_custom_call.1} parent=1 // pred_check_branch
      %1406 = sbr.rel (0) target = $region69
    $region68: #{tpu_custom_call.1} parent=1 // pred_region
      %s1408 = ssub.s32 512, 512
      %1409 = vsyncadd [#allocation4], %s1408
      %s1410 = sshll.u32 [#allocation13], 4
      %s1411 = int_to_ptr.vmem [resolvable:$true] %s1410
      %1416 = dma.vmem_to_hbm [thread:$0]  %s1411, 512, %s10, [#allocation4], 128, 128, 8
    $region69: #{tpu_custom_call.1} parent=1 // pred_fallthru
      _
    // Predicated region
    $region70: #{tpu_custom_call.1} parent=1 // pred_check
      _
    $region71: #{tpu_custom_call.1} parent=1 // pred_check_branch
      %1418 = sbr.rel (0) target = $region73
    $region72: #{tpu_custom_call.1} parent=1 // pred_region
      %1419 = dma.done [#allocation4], 512
    $region73: #{tpu_custom_call.1} parent=1 // pred_fallthru
      _
    %1420 = vsyncpa [#allocation3], 1
    %1421 = vsyncpa [#allocation6], 1
    %1422 = vsyncpa [#allocation9], 1
    %1423 = vsyncpa [#allocation12], 1
    %1424 = vsyncpa [#allocation4], 1

</llo_original>
